<compile_context>
chip_gen: v5e
topology: v5e:2x2
jax: 0.10.0
libtpu: 0.0.40
codegen_flags: <defaults>
</compile_context>

<pallas_src>
import jax
import jax.numpy as jnp
from jax.experimental import pallas as pl
from jax.experimental.pallas import tpu as pltpu

# ----------------------------- module config --------------------------------
SIZE = 1024          # len(self.data)
CHUNK = 8            # chunk_size
N_HASHES = 4         # multi_hash.n_hashes  -> output dim = 32
HASH_RANGE = 512     # multi-hash output range (power of 2, <= SIZE - CHUNK + 1,
                     # so h + c never indexes out of bounds, as torch requires)
LANE = 128           # fine-bucket width (= vreg lane count, = MXU K per pass)
N_Q = HASH_RANGE // LANE   # 4 coarse buckets
SHIFT = 32 - 9       # multiply-shift hash: top log2(HASH_RANGE) bits
Q_SHIFT = 7          # log2(LANE)
MAX_TILE = 2048      # max tokens per grid step (lane axis; multiple of 128)

# Deterministic multiply-shift hash parameters (the "MultiHash" module).
# TODO(synk): the original MultiHash module is not given; a multiply-shift hash
# with range HASH_RANGE=512 is assumed (range must be <= SIZE - CHUNK + 1 for
# torch's data[h + c] gather to stay in bounds).
HASH_A = [0x9E3779B1, 0x85EBCA77, 0xC2B2AE3D, 0x27D4EB2F]
HASH_B = [0x165667B1, 0xD3A2646C, 0xFD7046C5, 0xB55A4F09]


# ------------------------------- kernel --------------------------------------
def robe_kernel(tok_ref, tbl_ref, out_ref):
    # tok_ref: (1, TILE) int32 token ids, lane-dense
    # tbl_ref: (N_Q*CHUNK, LANE) f32 folded table: tbl[q*8 + c, r] = data[q*128 + r + c]
    # out_ref: (N_HASHES*CHUNK, TILE) f32, tokens stay on the lane axis
    tile = tok_ref.shape[-1]
    x = tok_ref[...].astype(jnp.uint32)                                     # (1, TILE)
    tbl = tbl_ref[...]                                                      # (32, 128)
    r_iota = jax.lax.broadcasted_iota(jnp.int32, (LANE, tile), 0)           # (128, TILE)

    for j in range(N_HASHES):
        mixed = x * jnp.uint32(HASH_A[j]) + jnp.uint32(HASH_B[j])           # wraps mod 2^32
        h = jax.lax.shift_right_logical(mixed, jnp.uint32(SHIFT))           # (1, TILE) in [0, 512)
        r = jax.lax.bitwise_and(h, jnp.uint32(LANE - 1)).astype(jnp.int32)  # fine bucket [0, 128)
        q = jax.lax.shift_right_logical(h, jnp.uint32(Q_SHIFT)).astype(jnp.int32)  # coarse [0, 4)

        # 128-wide one-hot (4x smaller than HASH_RANGE-wide) -> exactly one MXU pass (K=128).
        onehot = (r_iota == r).astype(jnp.float32)                          # (128, TILE)
        # res[q*8 + c, t] = data[q*128 + r_t + c]; HIGHEST keeps the f32 gather exact.
        res = jnp.dot(tbl, onehot,
                      preferred_element_type=jnp.float32,
                      precision=jax.lax.Precision.HIGHEST)                  # (32, TILE)

        # Pick each token's coarse bucket: 4-way broadcast compare/select/add.
        acc = (q == 0).astype(jnp.float32) * res[0:CHUNK, :]                # (8, TILE)
        for qv in range(1, N_Q):
            acc = acc + (q == qv).astype(jnp.float32) * res[qv * CHUNK:(qv + 1) * CHUNK, :]

        # Direct 8-sublane-aligned store for this hash (no concat temp).
        out_ref[j * CHUNK:(j + 1) * CHUNK, :] = acc


# ------------------------------ wrapper ---------------------------------------
def _choose_tile(n):
    # Lane-align the token count.  For >= 256 tokens, force >= 2 grid steps so
    # dimension_semantics=("parallel",) can shard across both v7x TensorCores,
    # while capping the tile at MAX_TILE to keep per-step overhead amortized.
    n128 = -(-n // 128) * 128
    if n128 < 256:
        return n128
    half = -(-(n128 // 2) // 128) * 128
    return min(MAX_TILE, half)


@jax.jit
def robe_embedding(tokens, data):
    """tokens: int array of any shape; data: (SIZE,) float32 embedding memory."""
    batch_shape = tokens.shape
    flat = tokens.reshape(-1).astype(jnp.int32)
    n = flat.shape[0]
    tile = _choose_tile(n)
    n_pad = pl.cdiv(n, tile) * tile
    flat = jnp.pad(flat, (0, n_pad - n)).reshape(1, n_pad)                  # lane-dense tokens

    # Parameter prep (glue): folded table tbl[q*8 + c, r] = data[q*128 + r + c]
    # shape (32, 128) ~ 16 KB; max index 3*128 + 7 + 127 = 518 < SIZE.
    q_i = jnp.arange(N_Q)[:, None, None]
    c_i = jnp.arange(CHUNK)[None, :, None]
    r_i = jnp.arange(LANE)[None, None, :]
    tbl = data[q_i * LANE + c_i + r_i].reshape(N_Q * CHUNK, LANE)           # (32, 128)

    out = pl.pallas_call(
        robe_kernel,
        out_shape=jax.ShapeDtypeStruct((N_HASHES * CHUNK, n_pad), jnp.float32),
        grid_spec=pltpu.PrefetchScalarGridSpec(
            num_scalar_prefetch=0,
            grid=(n_pad // tile,),
            in_specs=[
                pl.BlockSpec((1, tile), lambda i: (0, i)),
                pl.BlockSpec((N_Q * CHUNK, LANE), lambda i: (0, 0)),
            ],
            out_specs=pl.BlockSpec((N_HASHES * CHUNK, tile), lambda i: (0, i)),
        ),
        compiler_params=pltpu.CompilerParams(
            dimension_semantics=("parallel",),
            vmem_limit_bytes=32 * 1024 * 1024,   # working set is ~few MiB; fits v7x's 64 MiB
        ),
    )(flat, tbl)

    # (32, n_pad) -> (*batch, 32): drop padding, move tokens back to leading axes.
    # Row j*CHUNK + c holds data[h_j(token) + c]  == torch's hash-major reshape.
    # TODO(synk): for very large N this XLA transpose could be folded in-kernel
    # (write (tile, 32) blocks with tokens on sublanes); kept outside to retain
    # lane-dense full-width output stores.
    return out[:, :n].T.reshape(*batch_shape, N_HASHES * CHUNK)


# ------------------------------ reference -------------------------------------
def multi_hash_ref(tokens):
    x = tokens.astype(jnp.uint32)[..., None]                                # (..., 1)
    a = jnp.array(HASH_A, dtype=jnp.uint32)
    b = jnp.array(HASH_B, dtype=jnp.uint32)
    return jax.lax.shift_right_logical(x * a + b, jnp.uint32(SHIFT)).astype(jnp.int32)


def robe_embedding_ref(tokens, data):
    h = multi_hash_ref(tokens)                                              # (..., n_hashes)
    idx = h[..., None] + (jnp.arange(CHUNK) % SIZE)                         # (..., n_hashes, CHUNK)
    slices = data[idx]
    return slices.reshape(*tokens.shape, -1)


# -------------------------------- main ----------------------------------------
if __name__ == "__main__":
    key = jax.random.PRNGKey(0)
    k_data, k_tok = jax.random.split(key)

    # nn.init.uniform_(self.data): uniform [0, 1) of shape (SIZE,)
    data = jax.random.uniform(k_data, (SIZE,), dtype=jnp.float32)

    # input_tensor: integer ids, small batch of shape (2, 16)
    tokens = jax.random.randint(k_tok, (2, 16), minval=0, maxval=50000, dtype=jnp.int32)

    out = robe_embedding(tokens, data)
    out = jax.block_until_ready(out)

    ref = robe_embedding_ref(tokens, data)
    assert out.shape == (2, 16, N_HASHES * CHUNK), out.shape
    assert out.dtype == jnp.float32
    assert jnp.allclose(out, ref, atol=0.0, rtol=0.0), float(jnp.max(jnp.abs(out - ref)))

    print("KERNEL_OK")
</pallas_src>

<mosaic_0001>
module attributes {stable_mosaic.version = 11 : i64} {
  func.func @robe_kernel(%arg0: i32, %arg1: memref<1x128xi32, #tpu.memory_space<vmem>>, %arg2: memref<32x128xf32, #tpu.memory_space<vmem>>, %arg3: memref<32x128xf32, #tpu.memory_space<vmem>>) attributes {dimension_semantics = [#tpu.dimension_semantics<parallel>], iteration_bounds = array<i64: 1>, scalar_prefetch = 0 : i64, scratch_operands = 0 : i64, tpu.core_type = #tpu.core_type<tc>, window_params = [{transform_indices = @transform_0, window_bounds = array<i64: 1, 128>}, {pipeline_mode = #tpu.pipeline_mode<synchronous>, transform_indices = @transform_1, window_bounds = array<i64: 32, 128>}, {transform_indices = @transform_2, window_bounds = array<i64: 32, 128>}]} {
    %c0 = arith.constant 0 : index
    %c0_0 = arith.constant 0 : index
    %0 = vector.load %arg1[%c0, %c0_0] : memref<1x128xi32, #tpu.memory_space<vmem>>, vector<1x128xi32>
    %c0_1 = arith.constant 0 : index
    %c0_2 = arith.constant 0 : index
    %1 = vector.load %arg2[%c0_1, %c0_2] : memref<32x128xf32, #tpu.memory_space<vmem>>, vector<32x128xf32>
    %2 = tpu.iota {dimensions = array<i32: 0>} : vector<128x128xi32>
    %c-1640531535_i32 = arith.constant -1640531535 : i32
    %3 = vector.broadcast %c-1640531535_i32 : i32 to vector<1x128xi32>
    %4 = arith.muli %0, %3 : vector<1x128xi32>
    %c374761393_i32 = arith.constant 374761393 : i32
    %5 = vector.broadcast %c374761393_i32 : i32 to vector<1x128xi32>
    %6 = arith.addi %4, %5 : vector<1x128xi32>
    %c23_i32 = arith.constant 23 : i32
    %7 = vector.broadcast %c23_i32 : i32 to vector<1x128xi32>
    %8 = arith.shrui %6, %7 : vector<1x128xi32>
    %c127_i32 = arith.constant 127 : i32
    %9 = vector.broadcast %c127_i32 : i32 to vector<1x128xi32>
    %10 = arith.andi %8, %9 : vector<1x128xi32>
    %c7_i32 = arith.constant 7 : i32
    %11 = vector.broadcast %c7_i32 : i32 to vector<1x128xi32>
    %12 = arith.shrui %8, %11 : vector<1x128xi32>
    %13 = vector.broadcast %10 : vector<1x128xi32> to vector<128x128xi32>
    %14 = arith.cmpi eq, %2, %13 : vector<128x128xi32>
    %15 = arith.extui %14 : vector<128x128xi1> to vector<128x128xi32>
    %16 = arith.sitofp %15 : vector<128x128xi32> to vector<128x128xf32>
    %cst = arith.constant dense<0.000000e+00> : vector<32x128xf32>
    %17 = tpu.matmul %1, %16, %cst {dimension_numbers = #tpu.dot_dimension_numbers<[1], [0], [0], [1], [0, 0, 1, 1], [], []>, precision = #tpu.contract_precision<fp32>} : vector<32x128xf32>, vector<128x128xf32>, vector<32x128xf32> -> vector<32x128xf32>
    %c0_i32 = arith.constant 0 : i32
    %18 = vector.broadcast %c0_i32 : i32 to vector<1x128xi32>
    %19 = arith.cmpi eq, %12, %18 : vector<1x128xi32>
    %20 = arith.extui %19 : vector<1x128xi1> to vector<1x128xi32>
    %21 = arith.sitofp %20 : vector<1x128xi32> to vector<1x128xf32>
    %22 = vector.extract_strided_slice %17 {offsets = [0, 0], sizes = [8, 128], strides = [1, 1]} : vector<32x128xf32> to vector<8x128xf32>
    %23 = vector.broadcast %21 : vector<1x128xf32> to vector<8x128xf32>
    %24 = arith.mulf %23, %22 : vector<8x128xf32>
    %c1_i32 = arith.constant 1 : i32
    %25 = vector.broadcast %c1_i32 : i32 to vector<1x128xi32>
    %26 = arith.cmpi eq, %12, %25 : vector<1x128xi32>
    %27 = arith.extui %26 : vector<1x128xi1> to vector<1x128xi32>
    %28 = arith.sitofp %27 : vector<1x128xi32> to vector<1x128xf32>
    %29 = vector.extract_strided_slice %17 {offsets = [8, 0], sizes = [8, 128], strides = [1, 1]} : vector<32x128xf32> to vector<8x128xf32>
    %30 = vector.broadcast %28 : vector<1x128xf32> to vector<8x128xf32>
    %31 = arith.mulf %30, %29 : vector<8x128xf32>
    %32 = arith.addf %24, %31 : vector<8x128xf32>
    %c2_i32 = arith.constant 2 : i32
    %33 = vector.broadcast %c2_i32 : i32 to vector<1x128xi32>
    %34 = arith.cmpi eq, %12, %33 : vector<1x128xi32>
    %35 = arith.extui %34 : vector<1x128xi1> to vector<1x128xi32>
    %36 = arith.sitofp %35 : vector<1x128xi32> to vector<1x128xf32>
    %37 = vector.extract_strided_slice %17 {offsets = [16, 0], sizes = [8, 128], strides = [1, 1]} : vector<32x128xf32> to vector<8x128xf32>
    %38 = vector.broadcast %36 : vector<1x128xf32> to vector<8x128xf32>
    %39 = arith.mulf %38, %37 : vector<8x128xf32>
    %40 = arith.addf %32, %39 : vector<8x128xf32>
    %c3_i32 = arith.constant 3 : i32
    %41 = vector.broadcast %c3_i32 : i32 to vector<1x128xi32>
    %42 = arith.cmpi eq, %12, %41 : vector<1x128xi32>
    %43 = arith.extui %42 : vector<1x128xi1> to vector<1x128xi32>
    %44 = arith.sitofp %43 : vector<1x128xi32> to vector<1x128xf32>
    %45 = vector.extract_strided_slice %17 {offsets = [24, 0], sizes = [8, 128], strides = [1, 1]} : vector<32x128xf32> to vector<8x128xf32>
    %46 = vector.broadcast %44 : vector<1x128xf32> to vector<8x128xf32>
    %47 = arith.mulf %46, %45 : vector<8x128xf32>
    %48 = arith.addf %40, %47 : vector<8x128xf32>
    %c0_3 = arith.constant 0 : index
    %c0_4 = arith.constant 0 : index
    %49 = vector.load %arg3[%c0_3, %c0_4] : memref<32x128xf32, #tpu.memory_space<vmem>>, vector<8x128xf32>
    tpu.vector_store %arg3[%c0_3, %c0_4], %48 {strides = array<i32>} : memref<32x128xf32, #tpu.memory_space<vmem>>, vector<8x128xf32>,
    %c-2048144777_i32 = arith.constant -2048144777 : i32
    %50 = vector.broadcast %c-2048144777_i32 : i32 to vector<1x128xi32>
    %51 = arith.muli %0, %50 : vector<1x128xi32>
    %c-744332180_i32 = arith.constant -744332180 : i32
    %52 = vector.broadcast %c-744332180_i32 : i32 to vector<1x128xi32>
    %53 = arith.addi %51, %52 : vector<1x128xi32>
    %c23_i32_5 = arith.constant 23 : i32
    %54 = vector.broadcast %c23_i32_5 : i32 to vector<1x128xi32>
    %55 = arith.shrui %53, %54 : vector<1x128xi32>
    %c127_i32_6 = arith.constant 127 : i32
    %56 = vector.broadcast %c127_i32_6 : i32 to vector<1x128xi32>
    %57 = arith.andi %55, %56 : vector<1x128xi32>
    %c7_i32_7 = arith.constant 7 : i32
    %58 = vector.broadcast %c7_i32_7 : i32 to vector<1x128xi32>
    %59 = arith.shrui %55, %58 : vector<1x128xi32>
    %60 = vector.broadcast %57 : vector<1x128xi32> to vector<128x128xi32>
    %61 = arith.cmpi eq, %2, %60 : vector<128x128xi32>
    %62 = arith.extui %61 : vector<128x128xi1> to vector<128x128xi32>
    %63 = arith.sitofp %62 : vector<128x128xi32> to vector<128x128xf32>
    %cst_8 = arith.constant dense<0.000000e+00> : vector<32x128xf32>
    %64 = tpu.matmul %1, %63, %cst_8 {dimension_numbers = #tpu.dot_dimension_numbers<[1], [0], [0], [1], [0, 0, 1, 1], [], []>, precision = #tpu.contract_precision<fp32>} : vector<32x128xf32>, vector<128x128xf32>, vector<32x128xf32> -> vector<32x128xf32>
    %c0_i32_9 = arith.constant 0 : i32
    %65 = vector.broadcast %c0_i32_9 : i32 to vector<1x128xi32>
    %66 = arith.cmpi eq, %59, %65 : vector<1x128xi32>
    %67 = arith.extui %66 : vector<1x128xi1> to vector<1x128xi32>
    %68 = arith.sitofp %67 : vector<1x128xi32> to vector<1x128xf32>
    %69 = vector.extract_strided_slice %64 {offsets = [0, 0], sizes = [8, 128], strides = [1, 1]} : vector<32x128xf32> to vector<8x128xf32>
    %70 = vector.broadcast %68 : vector<1x128xf32> to vector<8x128xf32>
    %71 = arith.mulf %70, %69 : vector<8x128xf32>
    %c1_i32_10 = arith.constant 1 : i32
    %72 = vector.broadcast %c1_i32_10 : i32 to vector<1x128xi32>
    %73 = arith.cmpi eq, %59, %72 : vector<1x128xi32>
    %74 = arith.extui %73 : vector<1x128xi1> to vector<1x128xi32>
    %75 = arith.sitofp %74 : vector<1x128xi32> to vector<1x128xf32>
    %76 = vector.extract_strided_slice %64 {offsets = [8, 0], sizes = [8, 128], strides = [1, 1]} : vector<32x128xf32> to vector<8x128xf32>
    %77 = vector.broadcast %75 : vector<1x128xf32> to vector<8x128xf32>
    %78 = arith.mulf %77, %76 : vector<8x128xf32>
    %79 = arith.addf %71, %78 : vector<8x128xf32>
    %c2_i32_11 = arith.constant 2 : i32
    %80 = vector.broadcast %c2_i32_11 : i32 to vector<1x128xi32>
    %81 = arith.cmpi eq, %59, %80 : vector<1x128xi32>
    %82 = arith.extui %81 : vector<1x128xi1> to vector<1x128xi32>
    %83 = arith.sitofp %82 : vector<1x128xi32> to vector<1x128xf32>
    %84 = vector.extract_strided_slice %64 {offsets = [16, 0], sizes = [8, 128], strides = [1, 1]} : vector<32x128xf32> to vector<8x128xf32>
    %85 = vector.broadcast %83 : vector<1x128xf32> to vector<8x128xf32>
    %86 = arith.mulf %85, %84 : vector<8x128xf32>
    %87 = arith.addf %79, %86 : vector<8x128xf32>
    %c3_i32_12 = arith.constant 3 : i32
    %88 = vector.broadcast %c3_i32_12 : i32 to vector<1x128xi32>
    %89 = arith.cmpi eq, %59, %88 : vector<1x128xi32>
    %90 = arith.extui %89 : vector<1x128xi1> to vector<1x128xi32>
    %91 = arith.sitofp %90 : vector<1x128xi32> to vector<1x128xf32>
    %92 = vector.extract_strided_slice %64 {offsets = [24, 0], sizes = [8, 128], strides = [1, 1]} : vector<32x128xf32> to vector<8x128xf32>
    %93 = vector.broadcast %91 : vector<1x128xf32> to vector<8x128xf32>
    %94 = arith.mulf %93, %92 : vector<8x128xf32>
    %95 = arith.addf %87, %94 : vector<8x128xf32>
    %c8 = arith.constant 8 : index
    %c0_13 = arith.constant 0 : index
    %96 = vector.load %arg3[%c8, %c0_13] : memref<32x128xf32, #tpu.memory_space<vmem>>, vector<8x128xf32>
    tpu.vector_store %arg3[%c8, %c0_13], %95 {strides = array<i32>} : memref<32x128xf32, #tpu.memory_space<vmem>>, vector<8x128xf32>,
    %c-1028477379_i32 = arith.constant -1028477379 : i32
    %97 = vector.broadcast %c-1028477379_i32 : i32 to vector<1x128xi32>
    %98 = arith.muli %0, %97 : vector<1x128xi32>
    %c-42973499_i32 = arith.constant -42973499 : i32
    %99 = vector.broadcast %c-42973499_i32 : i32 to vector<1x128xi32>
    %100 = arith.addi %98, %99 : vector<1x128xi32>
    %c23_i32_14 = arith.constant 23 : i32
    %101 = vector.broadcast %c23_i32_14 : i32 to vector<1x128xi32>
    %102 = arith.shrui %100, %101 : vector<1x128xi32>
    %c127_i32_15 = arith.constant 127 : i32
    %103 = vector.broadcast %c127_i32_15 : i32 to vector<1x128xi32>
    %104 = arith.andi %102, %103 : vector<1x128xi32>
    %c7_i32_16 = arith.constant 7 : i32
    %105 = vector.broadcast %c7_i32_16 : i32 to vector<1x128xi32>
    %106 = arith.shrui %102, %105 : vector<1x128xi32>
    %107 = vector.broadcast %104 : vector<1x128xi32> to vector<128x128xi32>
    %108 = arith.cmpi eq, %2, %107 : vector<128x128xi32>
    %109 = arith.extui %108 : vector<128x128xi1> to vector<128x128xi32>
    %110 = arith.sitofp %109 : vector<128x128xi32> to vector<128x128xf32>
    %cst_17 = arith.constant dense<0.000000e+00> : vector<32x128xf32>
    %111 = tpu.matmul %1, %110, %cst_17 {dimension_numbers = #tpu.dot_dimension_numbers<[1], [0], [0], [1], [0, 0, 1, 1], [], []>, precision = #tpu.contract_precision<fp32>} : vector<32x128xf32>, vector<128x128xf32>, vector<32x128xf32> -> vector<32x128xf32>
    %c0_i32_18 = arith.constant 0 : i32
    %112 = vector.broadcast %c0_i32_18 : i32 to vector<1x128xi32>
    %113 = arith.cmpi eq, %106, %112 : vector<1x128xi32>
    %114 = arith.extui %113 : vector<1x128xi1> to vector<1x128xi32>
    %115 = arith.sitofp %114 : vector<1x128xi32> to vector<1x128xf32>
    %116 = vector.extract_strided_slice %111 {offsets = [0, 0], sizes = [8, 128], strides = [1, 1]} : vector<32x128xf32> to vector<8x128xf32>
    %117 = vector.broadcast %115 : vector<1x128xf32> to vector<8x128xf32>
    %118 = arith.mulf %117, %116 : vector<8x128xf32>
    %c1_i32_19 = arith.constant 1 : i32
    %119 = vector.broadcast %c1_i32_19 : i32 to vector<1x128xi32>
    %120 = arith.cmpi eq, %106, %119 : vector<1x128xi32>
    %121 = arith.extui %120 : vector<1x128xi1> to vector<1x128xi32>
    %122 = arith.sitofp %121 : vector<1x128xi32> to vector<1x128xf32>
    %123 = vector.extract_strided_slice %111 {offsets = [8, 0], sizes = [8, 128], strides = [1, 1]} : vector<32x128xf32> to vector<8x128xf32>
    %124 = vector.broadcast %122 : vector<1x128xf32> to vector<8x128xf32>
    %125 = arith.mulf %124, %123 : vector<8x128xf32>
    %126 = arith.addf %118, %125 : vector<8x128xf32>
    %c2_i32_20 = arith.constant 2 : i32
    %127 = vector.broadcast %c2_i32_20 : i32 to vector<1x128xi32>
    %128 = arith.cmpi eq, %106, %127 : vector<1x128xi32>
    %129 = arith.extui %128 : vector<1x128xi1> to vector<1x128xi32>
    %130 = arith.sitofp %129 : vector<1x128xi32> to vector<1x128xf32>
    %131 = vector.extract_strided_slice %111 {offsets = [16, 0], sizes = [8, 128], strides = [1, 1]} : vector<32x128xf32> to vector<8x128xf32>
    %132 = vector.broadcast %130 : vector<1x128xf32> to vector<8x128xf32>
    %133 = arith.mulf %132, %131 : vector<8x128xf32>
    %134 = arith.addf %126, %133 : vector<8x128xf32>
    %c3_i32_21 = arith.constant 3 : i32
    %135 = vector.broadcast %c3_i32_21 : i32 to vector<1x128xi32>
    %136 = arith.cmpi eq, %106, %135 : vector<1x128xi32>
    %137 = arith.extui %136 : vector<1x128xi1> to vector<1x128xi32>
    %138 = arith.sitofp %137 : vector<1x128xi32> to vector<1x128xf32>
    %139 = vector.extract_strided_slice %111 {offsets = [24, 0], sizes = [8, 128], strides = [1, 1]} : vector<32x128xf32> to vector<8x128xf32>
    %140 = vector.broadcast %138 : vector<1x128xf32> to vector<8x128xf32>
    %141 = arith.mulf %140, %139 : vector<8x128xf32>
    %142 = arith.addf %134, %141 : vector<8x128xf32>
    %c16 = arith.constant 16 : index
    %c0_22 = arith.constant 0 : index
    %143 = vector.load %arg3[%c16, %c0_22] : memref<32x128xf32, #tpu.memory_space<vmem>>, vector<8x128xf32>
    tpu.vector_store %arg3[%c16, %c0_22], %142 {strides = array<i32>} : memref<32x128xf32, #tpu.memory_space<vmem>>, vector<8x128xf32>,
    %c668265263_i32 = arith.constant 668265263 : i32
    %144 = vector.broadcast %c668265263_i32 : i32 to vector<1x128xi32>
    %145 = arith.muli %0, %144 : vector<1x128xi32>
    %c-1252372727_i32 = arith.constant -1252372727 : i32
    %146 = vector.broadcast %c-1252372727_i32 : i32 to vector<1x128xi32>
    %147 = arith.addi %145, %146 : vector<1x128xi32>
    %c23_i32_23 = arith.constant 23 : i32
    %148 = vector.broadcast %c23_i32_23 : i32 to vector<1x128xi32>
    %149 = arith.shrui %147, %148 : vector<1x128xi32>
    %c127_i32_24 = arith.constant 127 : i32
    %150 = vector.broadcast %c127_i32_24 : i32 to vector<1x128xi32>
    %151 = arith.andi %149, %150 : vector<1x128xi32>
    %c7_i32_25 = arith.constant 7 : i32
    %152 = vector.broadcast %c7_i32_25 : i32 to vector<1x128xi32>
    %153 = arith.shrui %149, %152 : vector<1x128xi32>
    %154 = vector.broadcast %151 : vector<1x128xi32> to vector<128x128xi32>
    %155 = arith.cmpi eq, %2, %154 : vector<128x128xi32>
    %156 = arith.extui %155 : vector<128x128xi1> to vector<128x128xi32>
    %157 = arith.sitofp %156 : vector<128x128xi32> to vector<128x128xf32>
    %cst_26 = arith.constant dense<0.000000e+00> : vector<32x128xf32>
    %158 = tpu.matmul %1, %157, %cst_26 {dimension_numbers = #tpu.dot_dimension_numbers<[1], [0], [0], [1], [0, 0, 1, 1], [], []>, precision = #tpu.contract_precision<fp32>} : vector<32x128xf32>, vector<128x128xf32>, vector<32x128xf32> -> vector<32x128xf32>
    %c0_i32_27 = arith.constant 0 : i32
    %159 = vector.broadcast %c0_i32_27 : i32 to vector<1x128xi32>
    %160 = arith.cmpi eq, %153, %159 : vector<1x128xi32>
    %161 = arith.extui %160 : vector<1x128xi1> to vector<1x128xi32>
    %162 = arith.sitofp %161 : vector<1x128xi32> to vector<1x128xf32>
    %163 = vector.extract_strided_slice %158 {offsets = [0, 0], sizes = [8, 128], strides = [1, 1]} : vector<32x128xf32> to vector<8x128xf32>
    %164 = vector.broadcast %162 : vector<1x128xf32> to vector<8x128xf32>
    %165 = arith.mulf %164, %163 : vector<8x128xf32>
    %c1_i32_28 = arith.constant 1 : i32
    %166 = vector.broadcast %c1_i32_28 : i32 to vector<1x128xi32>
    %167 = arith.cmpi eq, %153, %166 : vector<1x128xi32>
    %168 = arith.extui %167 : vector<1x128xi1> to vector<1x128xi32>
    %169 = arith.sitofp %168 : vector<1x128xi32> to vector<1x128xf32>
    %170 = vector.extract_strided_slice %158 {offsets = [8, 0], sizes = [8, 128], strides = [1, 1]} : vector<32x128xf32> to vector<8x128xf32>
    %171 = vector.broadcast %169 : vector<1x128xf32> to vector<8x128xf32>
    %172 = arith.mulf %171, %170 : vector<8x128xf32>
    %173 = arith.addf %165, %172 : vector<8x128xf32>
    %c2_i32_29 = arith.constant 2 : i32
    %174 = vector.broadcast %c2_i32_29 : i32 to vector<1x128xi32>
    %175 = arith.cmpi eq, %153, %174 : vector<1x128xi32>
    %176 = arith.extui %175 : vector<1x128xi1> to vector<1x128xi32>
    %177 = arith.sitofp %176 : vector<1x128xi32> to vector<1x128xf32>
    %178 = vector.extract_strided_slice %158 {offsets = [16, 0], sizes = [8, 128], strides = [1, 1]} : vector<32x128xf32> to vector<8x128xf32>
    %179 = vector.broadcast %177 : vector<1x128xf32> to vector<8x128xf32>
    %180 = arith.mulf %179, %178 : vector<8x128xf32>
    %181 = arith.addf %173, %180 : vector<8x128xf32>
    %c3_i32_30 = arith.constant 3 : i32
    %182 = vector.broadcast %c3_i32_30 : i32 to vector<1x128xi32>
    %183 = arith.cmpi eq, %153, %182 : vector<1x128xi32>
    %184 = arith.extui %183 : vector<1x128xi1> to vector<1x128xi32>
    %185 = arith.sitofp %184 : vector<1x128xi32> to vector<1x128xf32>
    %186 = vector.extract_strided_slice %158 {offsets = [24, 0], sizes = [8, 128], strides = [1, 1]} : vector<32x128xf32> to vector<8x128xf32>
    %187 = vector.broadcast %185 : vector<1x128xf32> to vector<8x128xf32>
    %188 = arith.mulf %187, %186 : vector<8x128xf32>
    %189 = arith.addf %181, %188 : vector<8x128xf32>
    %c24 = arith.constant 24 : index
    %c0_31 = arith.constant 0 : index
    %190 = vector.load %arg3[%c24, %c0_31] : memref<32x128xf32, #tpu.memory_space<vmem>>, vector<8x128xf32>
    tpu.vector_store %arg3[%c24, %c0_31], %189 {strides = array<i32>} : memref<32x128xf32, #tpu.memory_space<vmem>>, vector<8x128xf32>,
    return
  }
  func.func @transform_0(%arg0: i32) -> (i32, i32) {
    %c0_i32 = arith.constant 0 : i32
    %c0_i32_0 = arith.constant 0 : i32
    return %c0_i32, %arg0 : i32, i32
  }
  func.func @transform_1(%arg0: i32) -> (i32, i32) {
    %c0_i32 = arith.constant 0 : i32
    %c0_i32_0 = arith.constant 0 : i32
    %c0_i32_1 = arith.constant 0 : i32
    return %c0_i32, %c0_i32_0 : i32, i32
  }
  func.func @transform_2(%arg0: i32) -> (i32, i32) {
    %c0_i32 = arith.constant 0 : i32
    %c0_i32_0 = arith.constant 0 : i32
    return %c0_i32, %arg0 : i32, i32
  }
}

</mosaic_0001>

<llo_original>
// kernel: robe_embedding.1
$region0: #{robe_embedding.1}
  #allocation0 [shape = 'u32[]', space=smem, size = 0x4, offset = 0x4, fixed_abs, tag = 'smem constant byte address 0x4 - core index']
  #allocation1 [shape = 'u32[72,128]{1,0:T(1,128)}', space=vmem, size = 0x9000, scoped, tag = 'internal scratch']
  %s0 = inlined_call_operand.vmem [shape: s32[1,128], index: 0, kind: input, shape index: {}]
  %s1 = inlined_call_operand.vmem [shape: f32[32,128], index: 1, kind: input, shape index: {}]
  %s2 = inlined_call_operand.vmem [shape: f32[32,128], index: 2, kind: output, shape index: {}]
  %s3 = sld [smem:[#allocation0]]
  $region18: #{robe_embedding.1} parent=0
    _
  %s5 = ssub.s32 1, %s3
  %s6 = scalar_select 0, %s5, %s3
  // Predicated region
  $region2: #{robe_embedding.1} parent=0 // pred_check
    _
  $region3: #{robe_embedding.1} parent=0 // pred_check_branch
    %8 = sbr.rel (0) target = $region5
  $region4: #{robe_embedding.1} parent=0 // pred_region
    _
  $region5: #{robe_embedding.1} parent=0 // pred_fallthru
    _
  // Predicated region
  $region6: #{robe_embedding.1} parent=0 // pred_check
    _
  $region7: #{robe_embedding.1} parent=0 // pred_check_branch
    %10 = sbr.rel (0) target = $region9
  $region8: #{robe_embedding.1} parent=0 // pred_region
    _
  $region9: #{robe_embedding.1} parent=0 // pred_fallthru
    _
  %v11 = vld [vmem:[%s0] sm:$0x1]
  %v12 = vld [vmem:[%s1] sm:$0xff]
  %v13 = vld [vmem:[%s1 + $0x8] sm:$0xff]
  %v14 = vld [vmem:[%s1 + $0x10] sm:$0xff]
  %v15 = vld [vmem:[%s1 + $0x18] sm:$0xff]
  %v16 = vlaneseq
  %v17 = vshrl.u32 %v16, 7
  %v18 = vadd.s32 %v17, 8
  %v19 = vadd.s32 %v17, 16
  %v20 = vadd.s32 %v17, 24
  %v21 = vadd.s32 %v17, 32
  %v22 = vadd.s32 %v17, 40
  %v23 = vadd.s32 %v17, 48
  %v24 = vadd.s32 %v17, 56
  %v25 = vadd.s32 %v17, 64
  %v26 = vadd.s32 %v17, 72
  %v27 = vadd.s32 %v17, 80
  %v28 = vadd.s32 %v17, 88
  %v29 = vadd.s32 %v17, 96
  %v30 = vadd.s32 %v17, 104
  %v31 = vadd.s32 %v17, 112
  %v32 = vadd.s32 %v17, 120
  %v33 = vmul.u32 %v11, 2654435761
  %v34 = vadd.s32 %v33, 374761393
  %v35 = vshrl.u32 %v34, 23
  %v36 = vand.u32 %v35, 127
  %v37 = vshrl.u32 %v35, 7
  %v38 = vperm.slane %v36, 0
  %vm39 = vcmp.eq.s32.totalorder %v17, %v38
  %vm40 = vcmp.eq.s32.totalorder %v18, %v38
  %vm41 = vcmp.eq.s32.totalorder %v19, %v38
  %vm42 = vcmp.eq.s32.totalorder %v20, %v38
  %vm43 = vcmp.eq.s32.totalorder %v21, %v38
  %vm44 = vcmp.eq.s32.totalorder %v22, %v38
  %vm45 = vcmp.eq.s32.totalorder %v23, %v38
  %vm46 = vcmp.eq.s32.totalorder %v24, %v38
  %vm47 = vcmp.eq.s32.totalorder %v25, %v38
  %vm48 = vcmp.eq.s32.totalorder %v26, %v38
  %vm49 = vcmp.eq.s32.totalorder %v27, %v38
  %vm50 = vcmp.eq.s32.totalorder %v28, %v38
  %vm51 = vcmp.eq.s32.totalorder %v29, %v38
  %vm52 = vcmp.eq.s32.totalorder %v30, %v38
  %vm53 = vcmp.eq.s32.totalorder %v31, %v38
  %vm54 = vcmp.eq.s32.totalorder %v32, %v38
  %v55 = vsel %vm39, 1, 0
  %v56 = vsel %vm40, 1, 0
  %v57 = vsel %vm41, 1, 0
  %v58 = vsel %vm42, 1, 0
  %v59 = vsel %vm43, 1, 0
  %v60 = vsel %vm44, 1, 0
  %v61 = vsel %vm45, 1, 0
  %v62 = vsel %vm46, 1, 0
  %v63 = vsel %vm47, 1, 0
  %v64 = vsel %vm48, 1, 0
  %v65 = vsel %vm49, 1, 0
  %v66 = vsel %vm50, 1, 0
  %v67 = vsel %vm51, 1, 0
  %v68 = vsel %vm52, 1, 0
  %v69 = vsel %vm53, 1, 0
  %v70 = vsel %vm54, 1, 0
  %v71 = vcvt.s32.f32 %v55
  %v72 = vcvt.s32.f32 %v56
  %v73 = vcvt.s32.f32 %v57
  %v74 = vcvt.s32.f32 %v58
  %v75 = vcvt.s32.f32 %v59
  %v76 = vcvt.s32.f32 %v60
  %v77 = vcvt.s32.f32 %v61
  %v78 = vcvt.s32.f32 %v62
  %v79 = vcvt.s32.f32 %v63
  %v80 = vcvt.s32.f32 %v64
  %v81 = vcvt.s32.f32 %v65
  %v82 = vcvt.s32.f32 %v66
  %v83 = vcvt.s32.f32 %v67
  %v84 = vcvt.s32.f32 %v68
  %v85 = vcvt.s32.f32 %v69
  %v86 = vcvt.s32.f32 %v70
  %v87 = vand.u32 %v86, 4294901760
  %88 = vmatpush.msra.mxu0 %v87
  %v89 = vand.u32 %v85, 4294901760
  %90 = vmatpush.msra.mxu0 %v89
  %v91 = vand.u32 %v84, 4294901760
  %92 = vmatpush.msra.mxu0 %v91
  %v93 = vand.u32 %v83, 4294901760
  %94 = vmatpush.msra.mxu0 %v93
  %v95 = vand.u32 %v82, 4294901760
  %96 = vmatpush.msra.mxu0 %v95
  %v97 = vand.u32 %v81, 4294901760
  %98 = vmatpush.msra.mxu0 %v97
  %v99 = vand.u32 %v80, 4294901760
  %100 = vmatpush.msra.mxu0 %v99
  %v101 = vand.u32 %v79, 4294901760
  %102 = vmatpush.msra.mxu0 %v101
  %v103 = vand.u32 %v78, 4294901760
  %104 = vmatpush.msra.mxu0 %v103
  %v105 = vand.u32 %v77, 4294901760
  %106 = vmatpush.msra.mxu0 %v105
  %v107 = vand.u32 %v76, 4294901760
  %108 = vmatpush.msra.mxu0 %v107
  %v109 = vand.u32 %v75, 4294901760
  %110 = vmatpush.msra.mxu0 %v109
  %v111 = vand.u32 %v74, 4294901760
  %112 = vmatpush.msra.mxu0 %v111
  %v113 = vand.u32 %v73, 4294901760
  %114 = vmatpush.msra.mxu0 %v113
  %v115 = vand.u32 %v72, 4294901760
  %116 = vmatpush.msra.mxu0 %v115
  %v117 = vand.u32 %v71, 4294901760
  %118 = vmatpush.msra.mxu0 %v117
  %v119 = vand.u32 %v12, 4294901760
  %v120 = vsub.f32 %v12, %v119
  %v121 = vand.u32 %v120, 4294901760
  %v122 = vsub.f32 %v120, %v121
  %v123 = vand.u32 %v122, 4294901760
  %124 = vmatmul.f32.gmra.mxu0 %v123
  %v125 = vpop.f32.mrf.mxu0
  %v126 = vadd.f32 0.0, %v125
  %v127 = vand.u32 %v13, 4294901760
  %v128 = vsub.f32 %v13, %v127
  %v129 = vand.u32 %v128, 4294901760
  %v130 = vsub.f32 %v128, %v129
  %v131 = vand.u32 %v130, 4294901760
  %132 = vmatmul.f32.gmra.mxu0 %v131
  %v133 = vpop.f32.mrf.mxu0
  %v134 = vadd.f32 0.0, %v133
  %v135 = vand.u32 %v14, 4294901760
  %v136 = vsub.f32 %v14, %v135
  %v137 = vand.u32 %v136, 4294901760
  %v138 = vsub.f32 %v136, %v137
  %v139 = vand.u32 %v138, 4294901760
  %140 = vmatmul.f32.gmra.mxu0 %v139
  %v141 = vpop.f32.mrf.mxu0
  %v142 = vadd.f32 0.0, %v141
  %v143 = vand.u32 %v15, 4294901760
  %v144 = vsub.f32 %v15, %v143
  %v145 = vand.u32 %v144, 4294901760
  %v146 = vsub.f32 %v144, %v145
  %v147 = vand.u32 %v146, 4294901760
  %148 = vmatmul.f32.gmra.mxu0 %v147
  %v149 = vpop.f32.mrf.mxu0
  %v150 = vadd.f32 0.0, %v149
  %151 = vdwg.mxu0
  %v152 = vand.u32 %v86, 4294901760
  %v153 = vsub.f32 %v86, %v152
  %v154 = vand.u32 %v153, 4294901760
  %v155 = vsub.f32 %v153, %v154
  %v156 = vand.u32 %v155, 4294901760
  %157 = vmatpush.msra.mxu0 %v156
  %v158 = vand.u32 %v85, 4294901760
  %v159 = vsub.f32 %v85, %v158
  %v160 = vand.u32 %v159, 4294901760
  %v161 = vsub.f32 %v159, %v160
  %v162 = vand.u32 %v161, 4294901760
  %163 = vmatpush.msra.mxu0 %v162
  %v164 = vand.u32 %v84, 4294901760
  %v165 = vsub.f32 %v84, %v164
  %v166 = vand.u32 %v165, 4294901760
  %v167 = vsub.f32 %v165, %v166
  %v168 = vand.u32 %v167, 4294901760
  %169 = vmatpush.msra.mxu0 %v168
  %v170 = vand.u32 %v83, 4294901760
  %v171 = vsub.f32 %v83, %v170
  %v172 = vand.u32 %v171, 4294901760
  %v173 = vsub.f32 %v171, %v172
  %v174 = vand.u32 %v173, 4294901760
  %175 = vmatpush.msra.mxu0 %v174
  %v176 = vand.u32 %v82, 4294901760
  %v177 = vsub.f32 %v82, %v176
  %v178 = vand.u32 %v177, 4294901760
  %v179 = vsub.f32 %v177, %v178
  %v180 = vand.u32 %v179, 4294901760
  %181 = vmatpush.msra.mxu0 %v180
  %v182 = vand.u32 %v81, 4294901760
  %v183 = vsub.f32 %v81, %v182
  %v184 = vand.u32 %v183, 4294901760
  %v185 = vsub.f32 %v183, %v184
  %v186 = vand.u32 %v185, 4294901760
  %187 = vmatpush.msra.mxu0 %v186
  %v188 = vand.u32 %v80, 4294901760
  %v189 = vsub.f32 %v80, %v188
  %v190 = vand.u32 %v189, 4294901760
  %v191 = vsub.f32 %v189, %v190
  %v192 = vand.u32 %v191, 4294901760
  %193 = vmatpush.msra.mxu0 %v192
  %v194 = vand.u32 %v79, 4294901760
  %v195 = vsub.f32 %v79, %v194
  %v196 = vand.u32 %v195, 4294901760
  %v197 = vsub.f32 %v195, %v196
  %v198 = vand.u32 %v197, 4294901760
  %199 = vmatpush.msra.mxu0 %v198
  %v200 = vand.u32 %v78, 4294901760
  %v201 = vsub.f32 %v78, %v200
  %v202 = vand.u32 %v201, 4294901760
  %v203 = vsub.f32 %v201, %v202
  %v204 = vand.u32 %v203, 4294901760
  %205 = vmatpush.msra.mxu0 %v204
  %v206 = vand.u32 %v77, 4294901760
  %v207 = vsub.f32 %v77, %v206
  %v208 = vand.u32 %v207, 4294901760
  %v209 = vsub.f32 %v207, %v208
  %v210 = vand.u32 %v209, 4294901760
  %211 = vmatpush.msra.mxu0 %v210
  %v212 = vand.u32 %v76, 4294901760
  %v213 = vsub.f32 %v76, %v212
  %v214 = vand.u32 %v213, 4294901760
  %v215 = vsub.f32 %v213, %v214
  %v216 = vand.u32 %v215, 4294901760
  %217 = vmatpush.msra.mxu0 %v216
  %v218 = vand.u32 %v75, 4294901760
  %v219 = vsub.f32 %v75, %v218
  %v220 = vand.u32 %v219, 4294901760
  %v221 = vsub.f32 %v219, %v220
  %v222 = vand.u32 %v221, 4294901760
  %223 = vmatpush.msra.mxu0 %v222
  %v224 = vand.u32 %v74, 4294901760
  %v225 = vsub.f32 %v74, %v224
  %v226 = vand.u32 %v225, 4294901760
  %v227 = vsub.f32 %v225, %v226
  %v228 = vand.u32 %v227, 4294901760
  %229 = vmatpush.msra.mxu0 %v228
  %v230 = vand.u32 %v73, 4294901760
  %v231 = vsub.f32 %v73, %v230
  %v232 = vand.u32 %v231, 4294901760
  %v233 = vsub.f32 %v231, %v232
  %v234 = vand.u32 %v233, 4294901760
  %235 = vmatpush.msra.mxu0 %v234
  %v236 = vand.u32 %v72, 4294901760
  %v237 = vsub.f32 %v72, %v236
  %v238 = vand.u32 %v237, 4294901760
  %v239 = vsub.f32 %v237, %v238
  %v240 = vand.u32 %v239, 4294901760
  %241 = vmatpush.msra.mxu0 %v240
  %v242 = vand.u32 %v71, 4294901760
  %v243 = vsub.f32 %v71, %v242
  %v244 = vand.u32 %v243, 4294901760
  %v245 = vsub.f32 %v243, %v244
  %v246 = vand.u32 %v245, 4294901760
  %247 = vmatpush.msra.mxu0 %v246
  %v248 = vand.u32 %v12, 4294901760
  %249 = vmatmul.f32.gmra.mxu0 %v248
  %v250 = vpop.f32.mrf.mxu0
  %v251 = vadd.f32 %v126, %v250
  %v252 = vand.u32 %v13, 4294901760
  %253 = vmatmul.f32.gmra.mxu0 %v252
  %v254 = vpop.f32.mrf.mxu0
  %v255 = vadd.f32 %v134, %v254
  %v256 = vand.u32 %v14, 4294901760
  %257 = vmatmul.f32.gmra.mxu0 %v256
  %v258 = vpop.f32.mrf.mxu0
  %v259 = vadd.f32 %v142, %v258
  %v260 = vand.u32 %v15, 4294901760
  %261 = vmatmul.f32.gmra.mxu0 %v260
  %v262 = vpop.f32.mrf.mxu0
  %v263 = vadd.f32 %v150, %v262
  %264 = vdwg.mxu0
  %v265 = vand.u32 %v86, 4294901760
  %v266 = vsub.f32 %v86, %v265
  %267 = vmatpush.msra.mxu0 %v266
  %v268 = vand.u32 %v85, 4294901760
  %v269 = vsub.f32 %v85, %v268
  %270 = vmatpush.msra.mxu0 %v269
  %v271 = vand.u32 %v84, 4294901760
  %v272 = vsub.f32 %v84, %v271
  %273 = vmatpush.msra.mxu0 %v272
  %v274 = vand.u32 %v83, 4294901760
  %v275 = vsub.f32 %v83, %v274
  %276 = vmatpush.msra.mxu0 %v275
  %v277 = vand.u32 %v82, 4294901760
  %v278 = vsub.f32 %v82, %v277
  %279 = vmatpush.msra.mxu0 %v278
  %v280 = vand.u32 %v81, 4294901760
  %v281 = vsub.f32 %v81, %v280
  %282 = vmatpush.msra.mxu0 %v281
  %v283 = vand.u32 %v80, 4294901760
  %v284 = vsub.f32 %v80, %v283
  %285 = vmatpush.msra.mxu0 %v284
  %v286 = vand.u32 %v79, 4294901760
  %v287 = vsub.f32 %v79, %v286
  %288 = vmatpush.msra.mxu0 %v287
  %v289 = vand.u32 %v78, 4294901760
  %v290 = vsub.f32 %v78, %v289
  %291 = vmatpush.msra.mxu0 %v290
  %v292 = vand.u32 %v77, 4294901760
  %v293 = vsub.f32 %v77, %v292
  %294 = vmatpush.msra.mxu0 %v293
  %v295 = vand.u32 %v76, 4294901760
  %v296 = vsub.f32 %v76, %v295
  %297 = vmatpush.msra.mxu0 %v296
  %v298 = vand.u32 %v75, 4294901760
  %v299 = vsub.f32 %v75, %v298
  %300 = vmatpush.msra.mxu0 %v299
  %v301 = vand.u32 %v74, 4294901760
  %v302 = vsub.f32 %v74, %v301
  %303 = vmatpush.msra.mxu0 %v302
  %v304 = vand.u32 %v73, 4294901760
  %v305 = vsub.f32 %v73, %v304
  %306 = vmatpush.msra.mxu0 %v305
  %v307 = vand.u32 %v72, 4294901760
  %v308 = vsub.f32 %v72, %v307
  %309 = vmatpush.msra.mxu0 %v308
  %v310 = vand.u32 %v71, 4294901760
  %v311 = vsub.f32 %v71, %v310
  %312 = vmatpush.msra.mxu0 %v311
  %v313 = vand.u32 %v12, 4294901760
  %v314 = vsub.f32 %v12, %v313
  %315 = vmatmul.f32.gmra.mxu0 %v314
  %v316 = vpop.f32.mrf.mxu0
  %v317 = vadd.f32 %v251, %v316
  %v318 = vand.u32 %v13, 4294901760
  %v319 = vsub.f32 %v13, %v318
  %320 = vmatmul.f32.gmra.mxu0 %v319
  %v321 = vpop.f32.mrf.mxu0
  %v322 = vadd.f32 %v255, %v321
  %v323 = vand.u32 %v14, 4294901760
  %v324 = vsub.f32 %v14, %v323
  %325 = vmatmul.f32.gmra.mxu0 %v324
  %v326 = vpop.f32.mrf.mxu0
  %v327 = vadd.f32 %v259, %v326
  %v328 = vand.u32 %v15, 4294901760
  %v329 = vsub.f32 %v15, %v328
  %330 = vmatmul.f32.gmra.mxu0 %v329
  %v331 = vpop.f32.mrf.mxu0
  %v332 = vadd.f32 %v263, %v331
  %333 = vdwg.mxu0
  %v334 = vand.u32 %v86, 4294901760
  %335 = vmatpush.msra.mxu0 %v334
  %v336 = vand.u32 %v85, 4294901760
  %337 = vmatpush.msra.mxu0 %v336
  %v338 = vand.u32 %v84, 4294901760
  %339 = vmatpush.msra.mxu0 %v338
  %v340 = vand.u32 %v83, 4294901760
  %341 = vmatpush.msra.mxu0 %v340
  %v342 = vand.u32 %v82, 4294901760
  %343 = vmatpush.msra.mxu0 %v342
  %v344 = vand.u32 %v81, 4294901760
  %345 = vmatpush.msra.mxu0 %v344
  %v346 = vand.u32 %v80, 4294901760
  %347 = vmatpush.msra.mxu0 %v346
  %v348 = vand.u32 %v79, 4294901760
  %349 = vmatpush.msra.mxu0 %v348
  %v350 = vand.u32 %v78, 4294901760
  %351 = vmatpush.msra.mxu0 %v350
  %v352 = vand.u32 %v77, 4294901760
  %353 = vmatpush.msra.mxu0 %v352
  %v354 = vand.u32 %v76, 4294901760
  %355 = vmatpush.msra.mxu0 %v354
  %v356 = vand.u32 %v75, 4294901760
  %357 = vmatpush.msra.mxu0 %v356
  %v358 = vand.u32 %v74, 4294901760
  %359 = vmatpush.msra.mxu0 %v358
  %v360 = vand.u32 %v73, 4294901760
  %361 = vmatpush.msra.mxu0 %v360
  %v362 = vand.u32 %v72, 4294901760
  %363 = vmatpush.msra.mxu0 %v362
  %v364 = vand.u32 %v71, 4294901760
  %365 = vmatpush.msra.mxu0 %v364
  %v366 = vand.u32 %v12, 4294901760
  %v367 = vsub.f32 %v12, %v366
  %v368 = vand.u32 %v367, 4294901760
  %369 = vmatmul.f32.gmra.mxu0 %v368
  %v370 = vpop.f32.mrf.mxu0
  %v371 = vadd.f32 %v317, %v370
  %v372 = vand.u32 %v13, 4294901760
  %v373 = vsub.f32 %v13, %v372
  %v374 = vand.u32 %v373, 4294901760
  %375 = vmatmul.f32.gmra.mxu0 %v374
  %v376 = vpop.f32.mrf.mxu0
  %v377 = vadd.f32 %v322, %v376
  %v378 = vand.u32 %v14, 4294901760
  %v379 = vsub.f32 %v14, %v378
  %v380 = vand.u32 %v379, 4294901760
  %381 = vmatmul.f32.gmra.mxu0 %v380
  %v382 = vpop.f32.mrf.mxu0
  %v383 = vadd.f32 %v327, %v382
  %v384 = vand.u32 %v15, 4294901760
  %v385 = vsub.f32 %v15, %v384
  %v386 = vand.u32 %v385, 4294901760
  %387 = vmatmul.f32.gmra.mxu0 %v386
  %v388 = vpop.f32.mrf.mxu0
  %v389 = vadd.f32 %v332, %v388
  %390 = vdwg.mxu0
  %v391 = vand.u32 %v86, 4294901760
  %v392 = vsub.f32 %v86, %v391
  %v393 = vand.u32 %v392, 4294901760
  %394 = vmatpush.msra.mxu0 %v393
  %v395 = vand.u32 %v85, 4294901760
  %v396 = vsub.f32 %v85, %v395
  %v397 = vand.u32 %v396, 4294901760
  %398 = vmatpush.msra.mxu0 %v397
  %v399 = vand.u32 %v84, 4294901760
  %v400 = vsub.f32 %v84, %v399
  %v401 = vand.u32 %v400, 4294901760
  %402 = vmatpush.msra.mxu0 %v401
  %v403 = vand.u32 %v83, 4294901760
  %v404 = vsub.f32 %v83, %v403
  %v405 = vand.u32 %v404, 4294901760
  %406 = vmatpush.msra.mxu0 %v405
  %v407 = vand.u32 %v82, 4294901760
  %v408 = vsub.f32 %v82, %v407
  %v409 = vand.u32 %v408, 4294901760
  %410 = vmatpush.msra.mxu0 %v409
  %v411 = vand.u32 %v81, 4294901760
  %v412 = vsub.f32 %v81, %v411
  %v413 = vand.u32 %v412, 4294901760
  %414 = vmatpush.msra.mxu0 %v413
  %v415 = vand.u32 %v80, 4294901760
  %v416 = vsub.f32 %v80, %v415
  %v417 = vand.u32 %v416, 4294901760
  %418 = vmatpush.msra.mxu0 %v417
  %v419 = vand.u32 %v79, 4294901760
  %v420 = vsub.f32 %v79, %v419
  %v421 = vand.u32 %v420, 4294901760
  %422 = vmatpush.msra.mxu0 %v421
  %v423 = vand.u32 %v78, 4294901760
  %v424 = vsub.f32 %v78, %v423
  %v425 = vand.u32 %v424, 4294901760
  %426 = vmatpush.msra.mxu0 %v425
  %v427 = vand.u32 %v77, 4294901760
  %v428 = vsub.f32 %v77, %v427
  %v429 = vand.u32 %v428, 4294901760
  %430 = vmatpush.msra.mxu0 %v429
  %v431 = vand.u32 %v76, 4294901760
  %v432 = vsub.f32 %v76, %v431
  %v433 = vand.u32 %v432, 4294901760
  %434 = vmatpush.msra.mxu0 %v433
  %v435 = vand.u32 %v75, 4294901760
  %v436 = vsub.f32 %v75, %v435
  %v437 = vand.u32 %v436, 4294901760
  %438 = vmatpush.msra.mxu0 %v437
  %v439 = vand.u32 %v74, 4294901760
  %v440 = vsub.f32 %v74, %v439
  %v441 = vand.u32 %v440, 4294901760
  %442 = vmatpush.msra.mxu0 %v441
  %v443 = vand.u32 %v73, 4294901760
  %v444 = vsub.f32 %v73, %v443
  %v445 = vand.u32 %v444, 4294901760
  %446 = vmatpush.msra.mxu0 %v445
  %v447 = vand.u32 %v72, 4294901760
  %v448 = vsub.f32 %v72, %v447
  %v449 = vand.u32 %v448, 4294901760
  %450 = vmatpush.msra.mxu0 %v449
  %v451 = vand.u32 %v71, 4294901760
  %v452 = vsub.f32 %v71, %v451
  %v453 = vand.u32 %v452, 4294901760
  %454 = vmatpush.msra.mxu0 %v453
  %v455 = vand.u32 %v12, 4294901760
  %456 = vmatmul.f32.gmra.mxu0 %v455
  %v457 = vpop.f32.mrf.mxu0
  %v458 = vadd.f32 %v371, %v457
  %v459 = vand.u32 %v13, 4294901760
  %460 = vmatmul.f32.gmra.mxu0 %v459
  %v461 = vpop.f32.mrf.mxu0
  %v462 = vadd.f32 %v377, %v461
  %v463 = vand.u32 %v14, 4294901760
  %464 = vmatmul.f32.gmra.mxu0 %v463
  %v465 = vpop.f32.mrf.mxu0
  %v466 = vadd.f32 %v383, %v465
  %v467 = vand.u32 %v15, 4294901760
  %468 = vmatmul.f32.gmra.mxu0 %v467
  %v469 = vpop.f32.mrf.mxu0
  %v470 = vadd.f32 %v389, %v469
  %471 = vdwg.mxu0
  %v472 = vand.u32 %v86, 4294901760
  %473 = vmatpush.msra.mxu0 %v472
  %v474 = vand.u32 %v85, 4294901760
  %475 = vmatpush.msra.mxu0 %v474
  %v476 = vand.u32 %v84, 4294901760
  %477 = vmatpush.msra.mxu0 %v476
  %v478 = vand.u32 %v83, 4294901760
  %479 = vmatpush.msra.mxu0 %v478
  %v480 = vand.u32 %v82, 4294901760
  %481 = vmatpush.msra.mxu0 %v480
  %v482 = vand.u32 %v81, 4294901760
  %483 = vmatpush.msra.mxu0 %v482
  %v484 = vand.u32 %v80, 4294901760
  %485 = vmatpush.msra.mxu0 %v484
  %v486 = vand.u32 %v79, 4294901760
  %487 = vmatpush.msra.mxu0 %v486
  %v488 = vand.u32 %v78, 4294901760
  %489 = vmatpush.msra.mxu0 %v488
  %v490 = vand.u32 %v77, 4294901760
  %491 = vmatpush.msra.mxu0 %v490
  %v492 = vand.u32 %v76, 4294901760
  %493 = vmatpush.msra.mxu0 %v492
  %v494 = vand.u32 %v75, 4294901760
  %495 = vmatpush.msra.mxu0 %v494
  %v496 = vand.u32 %v74, 4294901760
  %497 = vmatpush.msra.mxu0 %v496
  %v498 = vand.u32 %v73, 4294901760
  %499 = vmatpush.msra.mxu0 %v498
  %v500 = vand.u32 %v72, 4294901760
  %501 = vmatpush.msra.mxu0 %v500
  %v502 = vand.u32 %v71, 4294901760
  %503 = vmatpush.msra.mxu0 %v502
  %v504 = vand.u32 %v12, 4294901760
  %505 = vmatmul.f32.gmra.mxu0 %v504
  %v506 = vpop.f32.mrf.mxu0
  %v507 = vadd.f32 %v458, %v506
  %v508 = vand.u32 %v13, 4294901760
  %509 = vmatmul.f32.gmra.mxu0 %v508
  %v510 = vpop.f32.mrf.mxu0
  %v511 = vadd.f32 %v462, %v510
  %v512 = vand.u32 %v14, 4294901760
  %513 = vmatmul.f32.gmra.mxu0 %v512
  %v514 = vpop.f32.mrf.mxu0
  %v515 = vadd.f32 %v466, %v514
  %v516 = vand.u32 %v15, 4294901760
  %517 = vmatmul.f32.gmra.mxu0 %v516
  %v518 = vpop.f32.mrf.mxu0
  %v519 = vadd.f32 %v470, %v518
  %520 = vdwg.mxu0
  %vm521 = vcmp.eq.s32.totalorder %v37, 0
  %v522 = vsel %vm521, 1, 0
  %v523 = vcvt.s32.f32 %v522
  %v525 = vperm.slane %v523, 0
  %v527 = vmul.f32 %v525, %v507
  %vm528 = vcmp.eq.s32.totalorder %v37, 1
  %v529 = vsel %vm528, 1, 0
  %v530 = vcvt.s32.f32 %v529
  %v532 = vperm.slane %v530, 0
  %v534 = vmul.f32 %v532, %v511
  %v535 = vadd.f32 %v527, %v534
  %vm536 = vcmp.eq.s32.totalorder %v37, 2
  %v537 = vsel %vm536, 1, 0
  %v538 = vcvt.s32.f32 %v537
  %v540 = vperm.slane %v538, 0
  %v542 = vmul.f32 %v540, %v515
  %v543 = vadd.f32 %v535, %v542
  %vm544 = vcmp.eq.s32.totalorder %v37, 3
  %v545 = vsel %vm544, 1, 0
  %v546 = vcvt.s32.f32 %v545
  %v548 = vperm.slane %v546, 0
  %v550 = vmul.f32 %v548, %v519
  %v551 = vadd.f32 %v543, %v550
  %552 = vst [vmem:[%s2] sm:$0xff] %v551
  %v553 = vmul.u32 %v11, 2246822519
  %v554 = vadd.s32 %v553, 3550635116
  %v555 = vshrl.u32 %v554, 23
  %v556 = vand.u32 %v555, 127
  %v557 = vshrl.u32 %v555, 7
  %v558 = vperm.slane %v556, 0
  %vm559 = vcmp.eq.s32.totalorder %v17, %v558
  %vm560 = vcmp.eq.s32.totalorder %v18, %v558
  %vm561 = vcmp.eq.s32.totalorder %v19, %v558
  %vm562 = vcmp.eq.s32.totalorder %v20, %v558
  %vm563 = vcmp.eq.s32.totalorder %v21, %v558
  %vm564 = vcmp.eq.s32.totalorder %v22, %v558
  %vm565 = vcmp.eq.s32.totalorder %v23, %v558
  %vm566 = vcmp.eq.s32.totalorder %v24, %v558
  %vm567 = vcmp.eq.s32.totalorder %v25, %v558
  %vm568 = vcmp.eq.s32.totalorder %v26, %v558
  %vm569 = vcmp.eq.s32.totalorder %v27, %v558
  %vm570 = vcmp.eq.s32.totalorder %v28, %v558
  %vm571 = vcmp.eq.s32.totalorder %v29, %v558
  %vm572 = vcmp.eq.s32.totalorder %v30, %v558
  %vm573 = vcmp.eq.s32.totalorder %v31, %v558
  %vm574 = vcmp.eq.s32.totalorder %v32, %v558
  %v575 = vsel %vm559, 1, 0
  %v576 = vsel %vm560, 1, 0
  %v577 = vsel %vm561, 1, 0
  %v578 = vsel %vm562, 1, 0
  %v579 = vsel %vm563, 1, 0
  %v580 = vsel %vm564, 1, 0
  %v581 = vsel %vm565, 1, 0
  %v582 = vsel %vm566, 1, 0
  %v583 = vsel %vm567, 1, 0
  %v584 = vsel %vm568, 1, 0
  %v585 = vsel %vm569, 1, 0
  %v586 = vsel %vm570, 1, 0
  %v587 = vsel %vm571, 1, 0
  %v588 = vsel %vm572, 1, 0
  %v589 = vsel %vm573, 1, 0
  %v590 = vsel %vm574, 1, 0
  %v591 = vcvt.s32.f32 %v575
  %v592 = vcvt.s32.f32 %v576
  %v593 = vcvt.s32.f32 %v577
  %v594 = vcvt.s32.f32 %v578
  %v595 = vcvt.s32.f32 %v579
  %v596 = vcvt.s32.f32 %v580
  %v597 = vcvt.s32.f32 %v581
  %v598 = vcvt.s32.f32 %v582
  %v599 = vcvt.s32.f32 %v583
  %v600 = vcvt.s32.f32 %v584
  %v601 = vcvt.s32.f32 %v585
  %v602 = vcvt.s32.f32 %v586
  %v603 = vcvt.s32.f32 %v587
  %v604 = vcvt.s32.f32 %v588
  %v605 = vcvt.s32.f32 %v589
  %v606 = vcvt.s32.f32 %v590
  %v607 = vand.u32 %v606, 4294901760
  %608 = vmatpush.msra.mxu0 %v607
  %v609 = vand.u32 %v605, 4294901760
  %610 = vmatpush.msra.mxu0 %v609
  %v611 = vand.u32 %v604, 4294901760
  %612 = vmatpush.msra.mxu0 %v611
  %v613 = vand.u32 %v603, 4294901760
  %614 = vmatpush.msra.mxu0 %v613
  %v615 = vand.u32 %v602, 4294901760
  %616 = vmatpush.msra.mxu0 %v615
  %v617 = vand.u32 %v601, 4294901760
  %618 = vmatpush.msra.mxu0 %v617
  %v619 = vand.u32 %v600, 4294901760
  %620 = vmatpush.msra.mxu0 %v619
  %v621 = vand.u32 %v599, 4294901760
  %622 = vmatpush.msra.mxu0 %v621
  %v623 = vand.u32 %v598, 4294901760
  %624 = vmatpush.msra.mxu0 %v623
  %v625 = vand.u32 %v597, 4294901760
  %626 = vmatpush.msra.mxu0 %v625
  %v627 = vand.u32 %v596, 4294901760
  %628 = vmatpush.msra.mxu0 %v627
  %v629 = vand.u32 %v595, 4294901760
  %630 = vmatpush.msra.mxu0 %v629
  %v631 = vand.u32 %v594, 4294901760
  %632 = vmatpush.msra.mxu0 %v631
  %v633 = vand.u32 %v593, 4294901760
  %634 = vmatpush.msra.mxu0 %v633
  %v635 = vand.u32 %v592, 4294901760
  %636 = vmatpush.msra.mxu0 %v635
  %v637 = vand.u32 %v591, 4294901760
  %638 = vmatpush.msra.mxu0 %v637
  %v639 = vand.u32 %v12, 4294901760
  %v640 = vsub.f32 %v12, %v639
  %v641 = vand.u32 %v640, 4294901760
  %v642 = vsub.f32 %v640, %v641
  %v643 = vand.u32 %v642, 4294901760
  %644 = vmatmul.f32.gmra.mxu0 %v643
  %v645 = vpop.f32.mrf.mxu0
  %v646 = vadd.f32 0.0, %v645
  %v647 = vand.u32 %v13, 4294901760
  %v648 = vsub.f32 %v13, %v647
  %v649 = vand.u32 %v648, 4294901760
  %v650 = vsub.f32 %v648, %v649
  %v651 = vand.u32 %v650, 4294901760
  %652 = vmatmul.f32.gmra.mxu0 %v651
  %v653 = vpop.f32.mrf.mxu0
  %v654 = vadd.f32 0.0, %v653
  %v655 = vand.u32 %v14, 4294901760
  %v656 = vsub.f32 %v14, %v655
  %v657 = vand.u32 %v656, 4294901760
  %v658 = vsub.f32 %v656, %v657
  %v659 = vand.u32 %v658, 4294901760
  %660 = vmatmul.f32.gmra.mxu0 %v659
  %v661 = vpop.f32.mrf.mxu0
  %v662 = vadd.f32 0.0, %v661
  %v663 = vand.u32 %v15, 4294901760
  %v664 = vsub.f32 %v15, %v663
  %v665 = vand.u32 %v664, 4294901760
  %v666 = vsub.f32 %v664, %v665
  %v667 = vand.u32 %v666, 4294901760
  %668 = vmatmul.f32.gmra.mxu0 %v667
  %v669 = vpop.f32.mrf.mxu0
  %v670 = vadd.f32 0.0, %v669
  %671 = vdwg.mxu0
  %v672 = vand.u32 %v606, 4294901760
  %v673 = vsub.f32 %v606, %v672
  %v674 = vand.u32 %v673, 4294901760
  %v675 = vsub.f32 %v673, %v674
  %v676 = vand.u32 %v675, 4294901760
  %677 = vmatpush.msra.mxu0 %v676
  %v678 = vand.u32 %v605, 4294901760
  %v679 = vsub.f32 %v605, %v678
  %v680 = vand.u32 %v679, 4294901760
  %v681 = vsub.f32 %v679, %v680
  %v682 = vand.u32 %v681, 4294901760
  %683 = vmatpush.msra.mxu0 %v682
  %v684 = vand.u32 %v604, 4294901760
  %v685 = vsub.f32 %v604, %v684
  %v686 = vand.u32 %v685, 4294901760
  %v687 = vsub.f32 %v685, %v686
  %v688 = vand.u32 %v687, 4294901760
  %689 = vmatpush.msra.mxu0 %v688
  %v690 = vand.u32 %v603, 4294901760
  %v691 = vsub.f32 %v603, %v690
  %v692 = vand.u32 %v691, 4294901760
  %v693 = vsub.f32 %v691, %v692
  %v694 = vand.u32 %v693, 4294901760
  %695 = vmatpush.msra.mxu0 %v694
  %v696 = vand.u32 %v602, 4294901760
  %v697 = vsub.f32 %v602, %v696
  %v698 = vand.u32 %v697, 4294901760
  %v699 = vsub.f32 %v697, %v698
  %v700 = vand.u32 %v699, 4294901760
  %701 = vmatpush.msra.mxu0 %v700
  %v702 = vand.u32 %v601, 4294901760
  %v703 = vsub.f32 %v601, %v702
  %v704 = vand.u32 %v703, 4294901760
  %v705 = vsub.f32 %v703, %v704
  %v706 = vand.u32 %v705, 4294901760
  %707 = vmatpush.msra.mxu0 %v706
  %v708 = vand.u32 %v600, 4294901760
  %v709 = vsub.f32 %v600, %v708
  %v710 = vand.u32 %v709, 4294901760
  %v711 = vsub.f32 %v709, %v710
  %v712 = vand.u32 %v711, 4294901760
  %713 = vmatpush.msra.mxu0 %v712
  %v714 = vand.u32 %v599, 4294901760
  %v715 = vsub.f32 %v599, %v714
  %v716 = vand.u32 %v715, 4294901760
  %v717 = vsub.f32 %v715, %v716
  %v718 = vand.u32 %v717, 4294901760
  %719 = vmatpush.msra.mxu0 %v718
  %v720 = vand.u32 %v598, 4294901760
  %v721 = vsub.f32 %v598, %v720
  %v722 = vand.u32 %v721, 4294901760
  %v723 = vsub.f32 %v721, %v722
  %v724 = vand.u32 %v723, 4294901760
  %725 = vmatpush.msra.mxu0 %v724
  %v726 = vand.u32 %v597, 4294901760
  %v727 = vsub.f32 %v597, %v726
  %v728 = vand.u32 %v727, 4294901760
  %v729 = vsub.f32 %v727, %v728
  %v730 = vand.u32 %v729, 4294901760
  %731 = vmatpush.msra.mxu0 %v730
  %v732 = vand.u32 %v596, 4294901760
  %v733 = vsub.f32 %v596, %v732
  %v734 = vand.u32 %v733, 4294901760
  %v735 = vsub.f32 %v733, %v734
  %v736 = vand.u32 %v735, 4294901760
  %737 = vmatpush.msra.mxu0 %v736
  %v738 = vand.u32 %v595, 4294901760
  %v739 = vsub.f32 %v595, %v738
  %v740 = vand.u32 %v739, 4294901760
  %v741 = vsub.f32 %v739, %v740
  %v742 = vand.u32 %v741, 4294901760
  %743 = vmatpush.msra.mxu0 %v742
  %v744 = vand.u32 %v594, 4294901760
  %v745 = vsub.f32 %v594, %v744
  %v746 = vand.u32 %v745, 4294901760
  %v747 = vsub.f32 %v745, %v746
  %v748 = vand.u32 %v747, 4294901760
  %749 = vmatpush.msra.mxu0 %v748
  %v750 = vand.u32 %v593, 4294901760
  %v751 = vsub.f32 %v593, %v750
  %v752 = vand.u32 %v751, 4294901760
  %v753 = vsub.f32 %v751, %v752
  %v754 = vand.u32 %v753, 4294901760
  %755 = vmatpush.msra.mxu0 %v754
  %v756 = vand.u32 %v592, 4294901760
  %v757 = vsub.f32 %v592, %v756
  %v758 = vand.u32 %v757, 4294901760
  %v759 = vsub.f32 %v757, %v758
  %v760 = vand.u32 %v759, 4294901760
  %761 = vmatpush.msra.mxu0 %v760
  %v762 = vand.u32 %v591, 4294901760
  %v763 = vsub.f32 %v591, %v762
  %v764 = vand.u32 %v763, 4294901760
  %v765 = vsub.f32 %v763, %v764
  %v766 = vand.u32 %v765, 4294901760
  %767 = vmatpush.msra.mxu0 %v766
  %v768 = vand.u32 %v12, 4294901760
  %769 = vmatmul.f32.gmra.mxu0 %v768
  %v770 = vpop.f32.mrf.mxu0
  %v771 = vadd.f32 %v646, %v770
  %v772 = vand.u32 %v13, 4294901760
  %773 = vmatmul.f32.gmra.mxu0 %v772
  %v774 = vpop.f32.mrf.mxu0
  %v775 = vadd.f32 %v654, %v774
  %v776 = vand.u32 %v14, 4294901760
  %777 = vmatmul.f32.gmra.mxu0 %v776
  %v778 = vpop.f32.mrf.mxu0
  %v779 = vadd.f32 %v662, %v778
  %v780 = vand.u32 %v15, 4294901760
  %781 = vmatmul.f32.gmra.mxu0 %v780
  %v782 = vpop.f32.mrf.mxu0
  %v783 = vadd.f32 %v670, %v782
  %784 = vdwg.mxu0
  %v785 = vand.u32 %v606, 4294901760
  %v786 = vsub.f32 %v606, %v785
  %787 = vmatpush.msra.mxu0 %v786
  %v788 = vand.u32 %v605, 4294901760
  %v789 = vsub.f32 %v605, %v788
  %790 = vmatpush.msra.mxu0 %v789
  %v791 = vand.u32 %v604, 4294901760
  %v792 = vsub.f32 %v604, %v791
  %793 = vmatpush.msra.mxu0 %v792
  %v794 = vand.u32 %v603, 4294901760
  %v795 = vsub.f32 %v603, %v794
  %796 = vmatpush.msra.mxu0 %v795
  %v797 = vand.u32 %v602, 4294901760
  %v798 = vsub.f32 %v602, %v797
  %799 = vmatpush.msra.mxu0 %v798
  %v800 = vand.u32 %v601, 4294901760
  %v801 = vsub.f32 %v601, %v800
  %802 = vmatpush.msra.mxu0 %v801
  %v803 = vand.u32 %v600, 4294901760
  %v804 = vsub.f32 %v600, %v803
  %805 = vmatpush.msra.mxu0 %v804
  %v806 = vand.u32 %v599, 4294901760
  %v807 = vsub.f32 %v599, %v806
  %808 = vmatpush.msra.mxu0 %v807
  %v809 = vand.u32 %v598, 4294901760
  %v810 = vsub.f32 %v598, %v809
  %811 = vmatpush.msra.mxu0 %v810
  %v812 = vand.u32 %v597, 4294901760
  %v813 = vsub.f32 %v597, %v812
  %814 = vmatpush.msra.mxu0 %v813
  %v815 = vand.u32 %v596, 4294901760
  %v816 = vsub.f32 %v596, %v815
  %817 = vmatpush.msra.mxu0 %v816
  %v818 = vand.u32 %v595, 4294901760
  %v819 = vsub.f32 %v595, %v818
  %820 = vmatpush.msra.mxu0 %v819
  %v821 = vand.u32 %v594, 4294901760
  %v822 = vsub.f32 %v594, %v821
  %823 = vmatpush.msra.mxu0 %v822
  %v824 = vand.u32 %v593, 4294901760
  %v825 = vsub.f32 %v593, %v824
  %826 = vmatpush.msra.mxu0 %v825
  %v827 = vand.u32 %v592, 4294901760
  %v828 = vsub.f32 %v592, %v827
  %829 = vmatpush.msra.mxu0 %v828
  %v830 = vand.u32 %v591, 4294901760
  %v831 = vsub.f32 %v591, %v830
  %832 = vmatpush.msra.mxu0 %v831
  %v833 = vand.u32 %v12, 4294901760
  %v834 = vsub.f32 %v12, %v833
  %835 = vmatmul.f32.gmra.mxu0 %v834
  %v836 = vpop.f32.mrf.mxu0
  %v837 = vadd.f32 %v771, %v836
  %v838 = vand.u32 %v13, 4294901760
  %v839 = vsub.f32 %v13, %v838
  %840 = vmatmul.f32.gmra.mxu0 %v839
  %v841 = vpop.f32.mrf.mxu0
  %v842 = vadd.f32 %v775, %v841
  %v843 = vand.u32 %v14, 4294901760
  %v844 = vsub.f32 %v14, %v843
  %845 = vmatmul.f32.gmra.mxu0 %v844
  %v846 = vpop.f32.mrf.mxu0
  %v847 = vadd.f32 %v779, %v846
  %v848 = vand.u32 %v15, 4294901760
  %v849 = vsub.f32 %v15, %v848
  %850 = vmatmul.f32.gmra.mxu0 %v849
  %v851 = vpop.f32.mrf.mxu0
  %v852 = vadd.f32 %v783, %v851
  %853 = vdwg.mxu0
  %v854 = vand.u32 %v606, 4294901760
  %855 = vmatpush.msra.mxu0 %v854
  %v856 = vand.u32 %v605, 4294901760
  %857 = vmatpush.msra.mxu0 %v856
  %v858 = vand.u32 %v604, 4294901760
  %859 = vmatpush.msra.mxu0 %v858
  %v860 = vand.u32 %v603, 4294901760
  %861 = vmatpush.msra.mxu0 %v860
  %v862 = vand.u32 %v602, 4294901760
  %863 = vmatpush.msra.mxu0 %v862
  %v864 = vand.u32 %v601, 4294901760
  %865 = vmatpush.msra.mxu0 %v864
  %v866 = vand.u32 %v600, 4294901760
  %867 = vmatpush.msra.mxu0 %v866
  %v868 = vand.u32 %v599, 4294901760
  %869 = vmatpush.msra.mxu0 %v868
  %v870 = vand.u32 %v598, 4294901760
  %871 = vmatpush.msra.mxu0 %v870
  %v872 = vand.u32 %v597, 4294901760
  %873 = vmatpush.msra.mxu0 %v872
  %v874 = vand.u32 %v596, 4294901760
  %875 = vmatpush.msra.mxu0 %v874
  %v876 = vand.u32 %v595, 4294901760
  %877 = vmatpush.msra.mxu0 %v876
  %v878 = vand.u32 %v594, 4294901760
  %879 = vmatpush.msra.mxu0 %v878
  %v880 = vand.u32 %v593, 4294901760
  %881 = vmatpush.msra.mxu0 %v880
  %v882 = vand.u32 %v592, 4294901760
  %883 = vmatpush.msra.mxu0 %v882
  %v884 = vand.u32 %v591, 4294901760
  %885 = vmatpush.msra.mxu0 %v884
  %v886 = vand.u32 %v12, 4294901760
  %v887 = vsub.f32 %v12, %v886
  %v888 = vand.u32 %v887, 4294901760
  %889 = vmatmul.f32.gmra.mxu0 %v888
  %v890 = vpop.f32.mrf.mxu0
  %v891 = vadd.f32 %v837, %v890
  %v892 = vand.u32 %v13, 4294901760
  %v893 = vsub.f32 %v13, %v892
  %v894 = vand.u32 %v893, 4294901760
  %895 = vmatmul.f32.gmra.mxu0 %v894
  %v896 = vpop.f32.mrf.mxu0
  %v897 = vadd.f32 %v842, %v896
  %v898 = vand.u32 %v14, 4294901760
  %v899 = vsub.f32 %v14, %v898
  %v900 = vand.u32 %v899, 4294901760
  %901 = vmatmul.f32.gmra.mxu0 %v900
  %v902 = vpop.f32.mrf.mxu0
  %v903 = vadd.f32 %v847, %v902
  %v904 = vand.u32 %v15, 4294901760
  %v905 = vsub.f32 %v15, %v904
  %v906 = vand.u32 %v905, 4294901760
  %907 = vmatmul.f32.gmra.mxu0 %v906
  %v908 = vpop.f32.mrf.mxu0
  %v909 = vadd.f32 %v852, %v908
  %910 = vdwg.mxu0
  %v911 = vand.u32 %v606, 4294901760
  %v912 = vsub.f32 %v606, %v911
  %v913 = vand.u32 %v912, 4294901760
  %914 = vmatpush.msra.mxu0 %v913
  %v915 = vand.u32 %v605, 4294901760
  %v916 = vsub.f32 %v605, %v915
  %v917 = vand.u32 %v916, 4294901760
  %918 = vmatpush.msra.mxu0 %v917
  %v919 = vand.u32 %v604, 4294901760
  %v920 = vsub.f32 %v604, %v919
  %v921 = vand.u32 %v920, 4294901760
  %922 = vmatpush.msra.mxu0 %v921
  %v923 = vand.u32 %v603, 4294901760
  %v924 = vsub.f32 %v603, %v923
  %v925 = vand.u32 %v924, 4294901760
  %926 = vmatpush.msra.mxu0 %v925
  %v927 = vand.u32 %v602, 4294901760
  %v928 = vsub.f32 %v602, %v927
  %v929 = vand.u32 %v928, 4294901760
  %930 = vmatpush.msra.mxu0 %v929
  %v931 = vand.u32 %v601, 4294901760
  %v932 = vsub.f32 %v601, %v931
  %v933 = vand.u32 %v932, 4294901760
  %934 = vmatpush.msra.mxu0 %v933
  %v935 = vand.u32 %v600, 4294901760
  %v936 = vsub.f32 %v600, %v935
  %v937 = vand.u32 %v936, 4294901760
  %938 = vmatpush.msra.mxu0 %v937
  %v939 = vand.u32 %v599, 4294901760
  %v940 = vsub.f32 %v599, %v939
  %v941 = vand.u32 %v940, 4294901760
  %942 = vmatpush.msra.mxu0 %v941
  %v943 = vand.u32 %v598, 4294901760
  %v944 = vsub.f32 %v598, %v943
  %v945 = vand.u32 %v944, 4294901760
  %946 = vmatpush.msra.mxu0 %v945
  %v947 = vand.u32 %v597, 4294901760
  %v948 = vsub.f32 %v597, %v947
  %v949 = vand.u32 %v948, 4294901760
  %950 = vmatpush.msra.mxu0 %v949
  %v951 = vand.u32 %v596, 4294901760
  %v952 = vsub.f32 %v596, %v951
  %v953 = vand.u32 %v952, 4294901760
  %954 = vmatpush.msra.mxu0 %v953
  %v955 = vand.u32 %v595, 4294901760
  %v956 = vsub.f32 %v595, %v955
  %v957 = vand.u32 %v956, 4294901760
  %958 = vmatpush.msra.mxu0 %v957
  %v959 = vand.u32 %v594, 4294901760
  %v960 = vsub.f32 %v594, %v959
  %v961 = vand.u32 %v960, 4294901760
  %962 = vmatpush.msra.mxu0 %v961
  %v963 = vand.u32 %v593, 4294901760
  %v964 = vsub.f32 %v593, %v963
  %v965 = vand.u32 %v964, 4294901760
  %966 = vmatpush.msra.mxu0 %v965
  %v967 = vand.u32 %v592, 4294901760
  %v968 = vsub.f32 %v592, %v967
  %v969 = vand.u32 %v968, 4294901760
  %970 = vmatpush.msra.mxu0 %v969
  %v971 = vand.u32 %v591, 4294901760
  %v972 = vsub.f32 %v591, %v971
  %v973 = vand.u32 %v972, 4294901760
  %974 = vmatpush.msra.mxu0 %v973
  %v975 = vand.u32 %v12, 4294901760
  %976 = vmatmul.f32.gmra.mxu0 %v975
  %v977 = vpop.f32.mrf.mxu0
  %v978 = vadd.f32 %v891, %v977
  %v979 = vand.u32 %v13, 4294901760
  %980 = vmatmul.f32.gmra.mxu0 %v979
  %v981 = vpop.f32.mrf.mxu0
  %v982 = vadd.f32 %v897, %v981
  %v983 = vand.u32 %v14, 4294901760
  %984 = vmatmul.f32.gmra.mxu0 %v983
  %v985 = vpop.f32.mrf.mxu0
  %v986 = vadd.f32 %v903, %v985
  %v987 = vand.u32 %v15, 4294901760
  %988 = vmatmul.f32.gmra.mxu0 %v987
  %v989 = vpop.f32.mrf.mxu0
  %v990 = vadd.f32 %v909, %v989
  %991 = vdwg.mxu0
  %v992 = vand.u32 %v606, 4294901760
  %993 = vmatpush.msra.mxu0 %v992
  %v994 = vand.u32 %v605, 4294901760
  %995 = vmatpush.msra.mxu0 %v994
  %v996 = vand.u32 %v604, 4294901760
  %997 = vmatpush.msra.mxu0 %v996
  %v998 = vand.u32 %v603, 4294901760
  %999 = vmatpush.msra.mxu0 %v998
  %v1000 = vand.u32 %v602, 4294901760
  %1001 = vmatpush.msra.mxu0 %v1000
  %v1002 = vand.u32 %v601, 4294901760
  %1003 = vmatpush.msra.mxu0 %v1002
  %v1004 = vand.u32 %v600, 4294901760
  %1005 = vmatpush.msra.mxu0 %v1004
  %v1006 = vand.u32 %v599, 4294901760
  %1007 = vmatpush.msra.mxu0 %v1006
  %v1008 = vand.u32 %v598, 4294901760
  %1009 = vmatpush.msra.mxu0 %v1008
  %v1010 = vand.u32 %v597, 4294901760
  %1011 = vmatpush.msra.mxu0 %v1010
  %v1012 = vand.u32 %v596, 4294901760
  %1013 = vmatpush.msra.mxu0 %v1012
  %v1014 = vand.u32 %v595, 4294901760
  %1015 = vmatpush.msra.mxu0 %v1014
  %v1016 = vand.u32 %v594, 4294901760
  %1017 = vmatpush.msra.mxu0 %v1016
  %v1018 = vand.u32 %v593, 4294901760
  %1019 = vmatpush.msra.mxu0 %v1018
  %v1020 = vand.u32 %v592, 4294901760
  %1021 = vmatpush.msra.mxu0 %v1020
  %v1022 = vand.u32 %v591, 4294901760
  %1023 = vmatpush.msra.mxu0 %v1022
  %v1024 = vand.u32 %v12, 4294901760
  %1025 = vmatmul.f32.gmra.mxu0 %v1024
  %v1026 = vpop.f32.mrf.mxu0
  %v1027 = vadd.f32 %v978, %v1026
  %v1028 = vand.u32 %v13, 4294901760
  %1029 = vmatmul.f32.gmra.mxu0 %v1028
  %v1030 = vpop.f32.mrf.mxu0
  %v1031 = vadd.f32 %v982, %v1030
  %v1032 = vand.u32 %v14, 4294901760
  %1033 = vmatmul.f32.gmra.mxu0 %v1032
  %v1034 = vpop.f32.mrf.mxu0
  %v1035 = vadd.f32 %v986, %v1034
  %v1036 = vand.u32 %v15, 4294901760
  %1037 = vmatmul.f32.gmra.mxu0 %v1036
  %v1038 = vpop.f32.mrf.mxu0
  %v1039 = vadd.f32 %v990, %v1038
  %1040 = vdwg.mxu0
  %vm1041 = vcmp.eq.s32.totalorder %v557, 0
  %v1042 = vsel %vm1041, 1, 0
  %v1043 = vcvt.s32.f32 %v1042
  %v1045 = vperm.slane %v1043, 0
  %v1047 = vmul.f32 %v1045, %v1027
  %vm1048 = vcmp.eq.s32.totalorder %v557, 1
  %v1049 = vsel %vm1048, 1, 0
  %v1050 = vcvt.s32.f32 %v1049
  %v1052 = vperm.slane %v1050, 0
  %v1054 = vmul.f32 %v1052, %v1031
  %v1055 = vadd.f32 %v1047, %v1054
  %vm1056 = vcmp.eq.s32.totalorder %v557, 2
  %v1057 = vsel %vm1056, 1, 0
  %v1058 = vcvt.s32.f32 %v1057
  %v1060 = vperm.slane %v1058, 0
  %v1062 = vmul.f32 %v1060, %v1035
  %v1063 = vadd.f32 %v1055, %v1062
  %vm1064 = vcmp.eq.s32.totalorder %v557, 3
  %v1065 = vsel %vm1064, 1, 0
  %v1066 = vcvt.s32.f32 %v1065
  %v1068 = vperm.slane %v1066, 0
  %v1070 = vmul.f32 %v1068, %v1039
  %v1071 = vadd.f32 %v1063, %v1070
  %1072 = vst [vmem:[%s2 + $0x8] sm:$0xff] %v1071
  %v1073 = vmul.u32 %v11, 3266489917
  %v1074 = vadd.s32 %v1073, 4251993797
  %v1075 = vshrl.u32 %v1074, 23
  %v1076 = vand.u32 %v1075, 127
  %v1077 = vshrl.u32 %v1075, 7
  %v1078 = vperm.slane %v1076, 0
  %vm1079 = vcmp.eq.s32.totalorder %v17, %v1078
  %vm1080 = vcmp.eq.s32.totalorder %v18, %v1078
  %vm1081 = vcmp.eq.s32.totalorder %v19, %v1078
  %vm1082 = vcmp.eq.s32.totalorder %v20, %v1078
  %vm1083 = vcmp.eq.s32.totalorder %v21, %v1078
  %vm1084 = vcmp.eq.s32.totalorder %v22, %v1078
  %vm1085 = vcmp.eq.s32.totalorder %v23, %v1078
  %vm1086 = vcmp.eq.s32.totalorder %v24, %v1078
  %vm1087 = vcmp.eq.s32.totalorder %v25, %v1078
  %vm1088 = vcmp.eq.s32.totalorder %v26, %v1078
  %vm1089 = vcmp.eq.s32.totalorder %v27, %v1078
  %vm1090 = vcmp.eq.s32.totalorder %v28, %v1078
  %vm1091 = vcmp.eq.s32.totalorder %v29, %v1078
  %vm1092 = vcmp.eq.s32.totalorder %v30, %v1078
  %vm1093 = vcmp.eq.s32.totalorder %v31, %v1078
  %vm1094 = vcmp.eq.s32.totalorder %v32, %v1078
  %v1095 = vsel %vm1079, 1, 0
  %v1096 = vsel %vm1080, 1, 0
  %v1097 = vsel %vm1081, 1, 0
  %v1098 = vsel %vm1082, 1, 0
  %v1099 = vsel %vm1083, 1, 0
  %v1100 = vsel %vm1084, 1, 0
  %v1101 = vsel %vm1085, 1, 0
  %v1102 = vsel %vm1086, 1, 0
  %v1103 = vsel %vm1087, 1, 0
  %v1104 = vsel %vm1088, 1, 0
  %v1105 = vsel %vm1089, 1, 0
  %v1106 = vsel %vm1090, 1, 0
  %v1107 = vsel %vm1091, 1, 0
  %v1108 = vsel %vm1092, 1, 0
  %v1109 = vsel %vm1093, 1, 0
  %v1110 = vsel %vm1094, 1, 0
  %v1111 = vcvt.s32.f32 %v1095
  %v1112 = vcvt.s32.f32 %v1096
  %v1113 = vcvt.s32.f32 %v1097
  %v1114 = vcvt.s32.f32 %v1098
  %v1115 = vcvt.s32.f32 %v1099
  %v1116 = vcvt.s32.f32 %v1100
  %v1117 = vcvt.s32.f32 %v1101
  %v1118 = vcvt.s32.f32 %v1102
  %v1119 = vcvt.s32.f32 %v1103
  %v1120 = vcvt.s32.f32 %v1104
  %v1121 = vcvt.s32.f32 %v1105
  %v1122 = vcvt.s32.f32 %v1106
  %v1123 = vcvt.s32.f32 %v1107
  %v1124 = vcvt.s32.f32 %v1108
  %v1125 = vcvt.s32.f32 %v1109
  %v1126 = vcvt.s32.f32 %v1110
  %v1127 = vand.u32 %v1126, 4294901760
  %1128 = vmatpush.msra.mxu0 %v1127
  %v1129 = vand.u32 %v1125, 4294901760
  %1130 = vmatpush.msra.mxu0 %v1129
  %v1131 = vand.u32 %v1124, 4294901760
  %1132 = vmatpush.msra.mxu0 %v1131
  %v1133 = vand.u32 %v1123, 4294901760
  %1134 = vmatpush.msra.mxu0 %v1133
  %v1135 = vand.u32 %v1122, 4294901760
  %1136 = vmatpush.msra.mxu0 %v1135
  %v1137 = vand.u32 %v1121, 4294901760
  %1138 = vmatpush.msra.mxu0 %v1137
  %v1139 = vand.u32 %v1120, 4294901760
  %1140 = vmatpush.msra.mxu0 %v1139
  %v1141 = vand.u32 %v1119, 4294901760
  %1142 = vmatpush.msra.mxu0 %v1141
  %v1143 = vand.u32 %v1118, 4294901760
  %1144 = vmatpush.msra.mxu0 %v1143
  %v1145 = vand.u32 %v1117, 4294901760
  %1146 = vmatpush.msra.mxu0 %v1145
  %v1147 = vand.u32 %v1116, 4294901760
  %1148 = vmatpush.msra.mxu0 %v1147
  %v1149 = vand.u32 %v1115, 4294901760
  %1150 = vmatpush.msra.mxu0 %v1149
  %v1151 = vand.u32 %v1114, 4294901760
  %1152 = vmatpush.msra.mxu0 %v1151
  %v1153 = vand.u32 %v1113, 4294901760
  %1154 = vmatpush.msra.mxu0 %v1153
  %v1155 = vand.u32 %v1112, 4294901760
  %1156 = vmatpush.msra.mxu0 %v1155
  %v1157 = vand.u32 %v1111, 4294901760
  %1158 = vmatpush.msra.mxu0 %v1157
  %v1159 = vand.u32 %v12, 4294901760
  %v1160 = vsub.f32 %v12, %v1159
  %v1161 = vand.u32 %v1160, 4294901760
  %v1162 = vsub.f32 %v1160, %v1161
  %v1163 = vand.u32 %v1162, 4294901760
  %1164 = vmatmul.f32.gmra.mxu0 %v1163
  %v1165 = vpop.f32.mrf.mxu0
  %v1166 = vadd.f32 0.0, %v1165
  %v1167 = vand.u32 %v13, 4294901760
  %v1168 = vsub.f32 %v13, %v1167
  %v1169 = vand.u32 %v1168, 4294901760
  %v1170 = vsub.f32 %v1168, %v1169
  %v1171 = vand.u32 %v1170, 4294901760
  %1172 = vmatmul.f32.gmra.mxu0 %v1171
  %v1173 = vpop.f32.mrf.mxu0
  %v1174 = vadd.f32 0.0, %v1173
  %v1175 = vand.u32 %v14, 4294901760
  %v1176 = vsub.f32 %v14, %v1175
  %v1177 = vand.u32 %v1176, 4294901760
  %v1178 = vsub.f32 %v1176, %v1177
  %v1179 = vand.u32 %v1178, 4294901760
  %1180 = vmatmul.f32.gmra.mxu0 %v1179
  %v1181 = vpop.f32.mrf.mxu0
  %v1182 = vadd.f32 0.0, %v1181
  %v1183 = vand.u32 %v15, 4294901760
  %v1184 = vsub.f32 %v15, %v1183
  %v1185 = vand.u32 %v1184, 4294901760
  %v1186 = vsub.f32 %v1184, %v1185
  %v1187 = vand.u32 %v1186, 4294901760
  %1188 = vmatmul.f32.gmra.mxu0 %v1187
  %v1189 = vpop.f32.mrf.mxu0
  %v1190 = vadd.f32 0.0, %v1189
  %1191 = vdwg.mxu0
  %v1192 = vand.u32 %v1126, 4294901760
  %v1193 = vsub.f32 %v1126, %v1192
  %v1194 = vand.u32 %v1193, 4294901760
  %v1195 = vsub.f32 %v1193, %v1194
  %v1196 = vand.u32 %v1195, 4294901760
  %1197 = vmatpush.msra.mxu0 %v1196
  %v1198 = vand.u32 %v1125, 4294901760
  %v1199 = vsub.f32 %v1125, %v1198
  %v1200 = vand.u32 %v1199, 4294901760
  %v1201 = vsub.f32 %v1199, %v1200
  %v1202 = vand.u32 %v1201, 4294901760
  %1203 = vmatpush.msra.mxu0 %v1202
  %v1204 = vand.u32 %v1124, 4294901760
  %v1205 = vsub.f32 %v1124, %v1204
  %v1206 = vand.u32 %v1205, 4294901760
  %v1207 = vsub.f32 %v1205, %v1206
  %v1208 = vand.u32 %v1207, 4294901760
  %1209 = vmatpush.msra.mxu0 %v1208
  %v1210 = vand.u32 %v1123, 4294901760
  %v1211 = vsub.f32 %v1123, %v1210
  %v1212 = vand.u32 %v1211, 4294901760
  %v1213 = vsub.f32 %v1211, %v1212
  %v1214 = vand.u32 %v1213, 4294901760
  %1215 = vmatpush.msra.mxu0 %v1214
  %v1216 = vand.u32 %v1122, 4294901760
  %v1217 = vsub.f32 %v1122, %v1216
  %v1218 = vand.u32 %v1217, 4294901760
  %v1219 = vsub.f32 %v1217, %v1218
  %v1220 = vand.u32 %v1219, 4294901760
  %1221 = vmatpush.msra.mxu0 %v1220
  %v1222 = vand.u32 %v1121, 4294901760
  %v1223 = vsub.f32 %v1121, %v1222
  %v1224 = vand.u32 %v1223, 4294901760
  %v1225 = vsub.f32 %v1223, %v1224
  %v1226 = vand.u32 %v1225, 4294901760
  %1227 = vmatpush.msra.mxu0 %v1226
  %v1228 = vand.u32 %v1120, 4294901760
  %v1229 = vsub.f32 %v1120, %v1228
  %v1230 = vand.u32 %v1229, 4294901760
  %v1231 = vsub.f32 %v1229, %v1230
  %v1232 = vand.u32 %v1231, 4294901760
  %1233 = vmatpush.msra.mxu0 %v1232
  %v1234 = vand.u32 %v1119, 4294901760
  %v1235 = vsub.f32 %v1119, %v1234
  %v1236 = vand.u32 %v1235, 4294901760
  %v1237 = vsub.f32 %v1235, %v1236
  %v1238 = vand.u32 %v1237, 4294901760
  %1239 = vmatpush.msra.mxu0 %v1238
  %v1240 = vand.u32 %v1118, 4294901760
  %v1241 = vsub.f32 %v1118, %v1240
  %v1242 = vand.u32 %v1241, 4294901760
  %v1243 = vsub.f32 %v1241, %v1242
  %v1244 = vand.u32 %v1243, 4294901760
  %1245 = vmatpush.msra.mxu0 %v1244
  %v1246 = vand.u32 %v1117, 4294901760
  %v1247 = vsub.f32 %v1117, %v1246
  %v1248 = vand.u32 %v1247, 4294901760
  %v1249 = vsub.f32 %v1247, %v1248
  %v1250 = vand.u32 %v1249, 4294901760
  %1251 = vmatpush.msra.mxu0 %v1250
  %v1252 = vand.u32 %v1116, 4294901760
  %v1253 = vsub.f32 %v1116, %v1252
  %v1254 = vand.u32 %v1253, 4294901760
  %v1255 = vsub.f32 %v1253, %v1254
  %v1256 = vand.u32 %v1255, 4294901760
  %1257 = vmatpush.msra.mxu0 %v1256
  %v1258 = vand.u32 %v1115, 4294901760
  %v1259 = vsub.f32 %v1115, %v1258
  %v1260 = vand.u32 %v1259, 4294901760
  %v1261 = vsub.f32 %v1259, %v1260
  %v1262 = vand.u32 %v1261, 4294901760
  %1263 = vmatpush.msra.mxu0 %v1262
  %v1264 = vand.u32 %v1114, 4294901760
  %v1265 = vsub.f32 %v1114, %v1264
  %v1266 = vand.u32 %v1265, 4294901760
  %v1267 = vsub.f32 %v1265, %v1266
  %v1268 = vand.u32 %v1267, 4294901760
  %1269 = vmatpush.msra.mxu0 %v1268
  %v1270 = vand.u32 %v1113, 4294901760
  %v1271 = vsub.f32 %v1113, %v1270
  %v1272 = vand.u32 %v1271, 4294901760
  %v1273 = vsub.f32 %v1271, %v1272
  %v1274 = vand.u32 %v1273, 4294901760
  %1275 = vmatpush.msra.mxu0 %v1274
  %v1276 = vand.u32 %v1112, 4294901760
  %v1277 = vsub.f32 %v1112, %v1276
  %v1278 = vand.u32 %v1277, 4294901760
  %v1279 = vsub.f32 %v1277, %v1278
  %v1280 = vand.u32 %v1279, 4294901760
  %1281 = vmatpush.msra.mxu0 %v1280
  %v1282 = vand.u32 %v1111, 4294901760
  %v1283 = vsub.f32 %v1111, %v1282
  %v1284 = vand.u32 %v1283, 4294901760
  %v1285 = vsub.f32 %v1283, %v1284
  %v1286 = vand.u32 %v1285, 4294901760
  %1287 = vmatpush.msra.mxu0 %v1286
  %v1288 = vand.u32 %v12, 4294901760
  %1289 = vmatmul.f32.gmra.mxu0 %v1288
  %v1290 = vpop.f32.mrf.mxu0
  %v1291 = vadd.f32 %v1166, %v1290
  %v1292 = vand.u32 %v13, 4294901760
  %1293 = vmatmul.f32.gmra.mxu0 %v1292
  %v1294 = vpop.f32.mrf.mxu0
  %v1295 = vadd.f32 %v1174, %v1294
  %v1296 = vand.u32 %v14, 4294901760
  %1297 = vmatmul.f32.gmra.mxu0 %v1296
  %v1298 = vpop.f32.mrf.mxu0
  %v1299 = vadd.f32 %v1182, %v1298
  %v1300 = vand.u32 %v15, 4294901760
  %1301 = vmatmul.f32.gmra.mxu0 %v1300
  %v1302 = vpop.f32.mrf.mxu0
  %v1303 = vadd.f32 %v1190, %v1302
  %1304 = vdwg.mxu0
  %v1305 = vand.u32 %v1126, 4294901760
  %v1306 = vsub.f32 %v1126, %v1305
  %1307 = vmatpush.msra.mxu0 %v1306
  %v1308 = vand.u32 %v1125, 4294901760
  %v1309 = vsub.f32 %v1125, %v1308
  %1310 = vmatpush.msra.mxu0 %v1309
  %v1311 = vand.u32 %v1124, 4294901760
  %v1312 = vsub.f32 %v1124, %v1311
  %1313 = vmatpush.msra.mxu0 %v1312
  %v1314 = vand.u32 %v1123, 4294901760
  %v1315 = vsub.f32 %v1123, %v1314
  %1316 = vmatpush.msra.mxu0 %v1315
  %v1317 = vand.u32 %v1122, 4294901760
  %v1318 = vsub.f32 %v1122, %v1317
  %1319 = vmatpush.msra.mxu0 %v1318
  %v1320 = vand.u32 %v1121, 4294901760
  %v1321 = vsub.f32 %v1121, %v1320
  %1322 = vmatpush.msra.mxu0 %v1321
  %v1323 = vand.u32 %v1120, 4294901760
  %v1324 = vsub.f32 %v1120, %v1323
  %1325 = vmatpush.msra.mxu0 %v1324
  %v1326 = vand.u32 %v1119, 4294901760
  %v1327 = vsub.f32 %v1119, %v1326
  %1328 = vmatpush.msra.mxu0 %v1327
  %v1329 = vand.u32 %v1118, 4294901760
  %v1330 = vsub.f32 %v1118, %v1329
  %1331 = vmatpush.msra.mxu0 %v1330
  %v1332 = vand.u32 %v1117, 4294901760
  %v1333 = vsub.f32 %v1117, %v1332
  %1334 = vmatpush.msra.mxu0 %v1333
  %v1335 = vand.u32 %v1116, 4294901760
  %v1336 = vsub.f32 %v1116, %v1335
  %1337 = vmatpush.msra.mxu0 %v1336
  %v1338 = vand.u32 %v1115, 4294901760
  %v1339 = vsub.f32 %v1115, %v1338
  %1340 = vmatpush.msra.mxu0 %v1339
  %v1341 = vand.u32 %v1114, 4294901760
  %v1342 = vsub.f32 %v1114, %v1341
  %1343 = vmatpush.msra.mxu0 %v1342
  %v1344 = vand.u32 %v1113, 4294901760
  %v1345 = vsub.f32 %v1113, %v1344
  %1346 = vmatpush.msra.mxu0 %v1345
  %v1347 = vand.u32 %v1112, 4294901760
  %v1348 = vsub.f32 %v1112, %v1347
  %1349 = vmatpush.msra.mxu0 %v1348
  %v1350 = vand.u32 %v1111, 4294901760
  %v1351 = vsub.f32 %v1111, %v1350
  %1352 = vmatpush.msra.mxu0 %v1351
  %v1353 = vand.u32 %v12, 4294901760
  %v1354 = vsub.f32 %v12, %v1353
  %1355 = vmatmul.f32.gmra.mxu0 %v1354
  %v1356 = vpop.f32.mrf.mxu0
  %v1357 = vadd.f32 %v1291, %v1356
  %v1358 = vand.u32 %v13, 4294901760
  %v1359 = vsub.f32 %v13, %v1358
  %1360 = vmatmul.f32.gmra.mxu0 %v1359
  %v1361 = vpop.f32.mrf.mxu0
  %v1362 = vadd.f32 %v1295, %v1361
  %v1363 = vand.u32 %v14, 4294901760
  %v1364 = vsub.f32 %v14, %v1363
  %1365 = vmatmul.f32.gmra.mxu0 %v1364
  %v1366 = vpop.f32.mrf.mxu0
  %v1367 = vadd.f32 %v1299, %v1366
  %v1368 = vand.u32 %v15, 4294901760
  %v1369 = vsub.f32 %v15, %v1368
  %1370 = vmatmul.f32.gmra.mxu0 %v1369
  %v1371 = vpop.f32.mrf.mxu0
  %v1372 = vadd.f32 %v1303, %v1371
  %1373 = vdwg.mxu0
  %v1374 = vand.u32 %v1126, 4294901760
  %1375 = vmatpush.msra.mxu0 %v1374
  %v1376 = vand.u32 %v1125, 4294901760
  %1377 = vmatpush.msra.mxu0 %v1376
  %v1378 = vand.u32 %v1124, 4294901760
  %1379 = vmatpush.msra.mxu0 %v1378
  %v1380 = vand.u32 %v1123, 4294901760
  %1381 = vmatpush.msra.mxu0 %v1380
  %v1382 = vand.u32 %v1122, 4294901760
  %1383 = vmatpush.msra.mxu0 %v1382
  %v1384 = vand.u32 %v1121, 4294901760
  %1385 = vmatpush.msra.mxu0 %v1384
  %v1386 = vand.u32 %v1120, 4294901760
  %1387 = vmatpush.msra.mxu0 %v1386
  %v1388 = vand.u32 %v1119, 4294901760
  %1389 = vmatpush.msra.mxu0 %v1388
  %v1390 = vand.u32 %v1118, 4294901760
  %1391 = vmatpush.msra.mxu0 %v1390
  %v1392 = vand.u32 %v1117, 4294901760
  %1393 = vmatpush.msra.mxu0 %v1392
  %v1394 = vand.u32 %v1116, 4294901760
  %1395 = vmatpush.msra.mxu0 %v1394
  %v1396 = vand.u32 %v1115, 4294901760
  %1397 = vmatpush.msra.mxu0 %v1396
  %v1398 = vand.u32 %v1114, 4294901760
  %1399 = vmatpush.msra.mxu0 %v1398
  %v1400 = vand.u32 %v1113, 4294901760
  %1401 = vmatpush.msra.mxu0 %v1400
  %v1402 = vand.u32 %v1112, 4294901760
  %1403 = vmatpush.msra.mxu0 %v1402
  %v1404 = vand.u32 %v1111, 4294901760
  %1405 = vmatpush.msra.mxu0 %v1404
  %v1406 = vand.u32 %v12, 4294901760
  %v1407 = vsub.f32 %v12, %v1406
  %v1408 = vand.u32 %v1407, 4294901760
  %1409 = vmatmul.f32.gmra.mxu0 %v1408
  %v1410 = vpop.f32.mrf.mxu0
  %v1411 = vadd.f32 %v1357, %v1410
  %v1412 = vand.u32 %v13, 4294901760
  %v1413 = vsub.f32 %v13, %v1412
  %v1414 = vand.u32 %v1413, 4294901760
  %1415 = vmatmul.f32.gmra.mxu0 %v1414
  %v1416 = vpop.f32.mrf.mxu0
  %v1417 = vadd.f32 %v1362, %v1416
  %v1418 = vand.u32 %v14, 4294901760
  %v1419 = vsub.f32 %v14, %v1418
  %v1420 = vand.u32 %v1419, 4294901760
  %1421 = vmatmul.f32.gmra.mxu0 %v1420
  %v1422 = vpop.f32.mrf.mxu0
  %v1423 = vadd.f32 %v1367, %v1422
  %v1424 = vand.u32 %v15, 4294901760
  %v1425 = vsub.f32 %v15, %v1424
  %v1426 = vand.u32 %v1425, 4294901760
  %1427 = vmatmul.f32.gmra.mxu0 %v1426
  %v1428 = vpop.f32.mrf.mxu0
  %v1429 = vadd.f32 %v1372, %v1428
  %1430 = vdwg.mxu0
  %v1431 = vand.u32 %v1126, 4294901760
  %v1432 = vsub.f32 %v1126, %v1431
  %v1433 = vand.u32 %v1432, 4294901760
  %1434 = vmatpush.msra.mxu0 %v1433
  %v1435 = vand.u32 %v1125, 4294901760
  %v1436 = vsub.f32 %v1125, %v1435
  %v1437 = vand.u32 %v1436, 4294901760
  %1438 = vmatpush.msra.mxu0 %v1437
  %v1439 = vand.u32 %v1124, 4294901760
  %v1440 = vsub.f32 %v1124, %v1439
  %v1441 = vand.u32 %v1440, 4294901760
  %1442 = vmatpush.msra.mxu0 %v1441
  %v1443 = vand.u32 %v1123, 4294901760
  %v1444 = vsub.f32 %v1123, %v1443
  %v1445 = vand.u32 %v1444, 4294901760
  %1446 = vmatpush.msra.mxu0 %v1445
  %v1447 = vand.u32 %v1122, 4294901760
  %v1448 = vsub.f32 %v1122, %v1447
  %v1449 = vand.u32 %v1448, 4294901760
  %1450 = vmatpush.msra.mxu0 %v1449
  %v1451 = vand.u32 %v1121, 4294901760
  %v1452 = vsub.f32 %v1121, %v1451
  %v1453 = vand.u32 %v1452, 4294901760
  %1454 = vmatpush.msra.mxu0 %v1453
  %v1455 = vand.u32 %v1120, 4294901760
  %v1456 = vsub.f32 %v1120, %v1455
  %v1457 = vand.u32 %v1456, 4294901760
  %1458 = vmatpush.msra.mxu0 %v1457
  %v1459 = vand.u32 %v1119, 4294901760
  %v1460 = vsub.f32 %v1119, %v1459
  %v1461 = vand.u32 %v1460, 4294901760
  %1462 = vmatpush.msra.mxu0 %v1461
  %v1463 = vand.u32 %v1118, 4294901760
  %v1464 = vsub.f32 %v1118, %v1463
  %v1465 = vand.u32 %v1464, 4294901760
  %1466 = vmatpush.msra.mxu0 %v1465
  %v1467 = vand.u32 %v1117, 4294901760
  %v1468 = vsub.f32 %v1117, %v1467
  %v1469 = vand.u32 %v1468, 4294901760
  %1470 = vmatpush.msra.mxu0 %v1469
  %v1471 = vand.u32 %v1116, 4294901760
  %v1472 = vsub.f32 %v1116, %v1471
  %v1473 = vand.u32 %v1472, 4294901760
  %1474 = vmatpush.msra.mxu0 %v1473
  %v1475 = vand.u32 %v1115, 4294901760
  %v1476 = vsub.f32 %v1115, %v1475
  %v1477 = vand.u32 %v1476, 4294901760
  %1478 = vmatpush.msra.mxu0 %v1477
  %v1479 = vand.u32 %v1114, 4294901760
  %v1480 = vsub.f32 %v1114, %v1479
  %v1481 = vand.u32 %v1480, 4294901760
  %1482 = vmatpush.msra.mxu0 %v1481
  %v1483 = vand.u32 %v1113, 4294901760
  %v1484 = vsub.f32 %v1113, %v1483
  %v1485 = vand.u32 %v1484, 4294901760
  %1486 = vmatpush.msra.mxu0 %v1485
  %v1487 = vand.u32 %v1112, 4294901760
  %v1488 = vsub.f32 %v1112, %v1487
  %v1489 = vand.u32 %v1488, 4294901760
  %1490 = vmatpush.msra.mxu0 %v1489
  %v1491 = vand.u32 %v1111, 4294901760
  %v1492 = vsub.f32 %v1111, %v1491
  %v1493 = vand.u32 %v1492, 4294901760
  %1494 = vmatpush.msra.mxu0 %v1493
  %v1495 = vand.u32 %v12, 4294901760
  %1496 = vmatmul.f32.gmra.mxu0 %v1495
  %v1497 = vpop.f32.mrf.mxu0
  %v1498 = vadd.f32 %v1411, %v1497
  %v1499 = vand.u32 %v13, 4294901760
  %1500 = vmatmul.f32.gmra.mxu0 %v1499
  %v1501 = vpop.f32.mrf.mxu0
  %v1502 = vadd.f32 %v1417, %v1501
  %v1503 = vand.u32 %v14, 4294901760
  %1504 = vmatmul.f32.gmra.mxu0 %v1503
  %v1505 = vpop.f32.mrf.mxu0
  %v1506 = vadd.f32 %v1423, %v1505
  %v1507 = vand.u32 %v15, 4294901760
  %1508 = vmatmul.f32.gmra.mxu0 %v1507
  %v1509 = vpop.f32.mrf.mxu0
  %v1510 = vadd.f32 %v1429, %v1509
  %1511 = vdwg.mxu0
  %v1512 = vand.u32 %v1126, 4294901760
  %1513 = vmatpush.msra.mxu0 %v1512
  %v1514 = vand.u32 %v1125, 4294901760
  %1515 = vmatpush.msra.mxu0 %v1514
  %v1516 = vand.u32 %v1124, 4294901760
  %1517 = vmatpush.msra.mxu0 %v1516
  %v1518 = vand.u32 %v1123, 4294901760
  %1519 = vmatpush.msra.mxu0 %v1518
  %v1520 = vand.u32 %v1122, 4294901760
  %1521 = vmatpush.msra.mxu0 %v1520
  %v1522 = vand.u32 %v1121, 4294901760
  %1523 = vmatpush.msra.mxu0 %v1522
  %v1524 = vand.u32 %v1120, 4294901760
  %1525 = vmatpush.msra.mxu0 %v1524
  %v1526 = vand.u32 %v1119, 4294901760
  %1527 = vmatpush.msra.mxu0 %v1526
  %v1528 = vand.u32 %v1118, 4294901760
  %1529 = vmatpush.msra.mxu0 %v1528
  %v1530 = vand.u32 %v1117, 4294901760
  %1531 = vmatpush.msra.mxu0 %v1530
  %v1532 = vand.u32 %v1116, 4294901760
  %1533 = vmatpush.msra.mxu0 %v1532
  %v1534 = vand.u32 %v1115, 4294901760
  %1535 = vmatpush.msra.mxu0 %v1534
  %v1536 = vand.u32 %v1114, 4294901760
  %1537 = vmatpush.msra.mxu0 %v1536
  %v1538 = vand.u32 %v1113, 4294901760
  %1539 = vmatpush.msra.mxu0 %v1538
  %v1540 = vand.u32 %v1112, 4294901760
  %1541 = vmatpush.msra.mxu0 %v1540
  %v1542 = vand.u32 %v1111, 4294901760
  %1543 = vmatpush.msra.mxu0 %v1542
  %v1544 = vand.u32 %v12, 4294901760
  %1545 = vmatmul.f32.gmra.mxu0 %v1544
  %v1546 = vpop.f32.mrf.mxu0
  %v1547 = vadd.f32 %v1498, %v1546
  %v1548 = vand.u32 %v13, 4294901760
  %1549 = vmatmul.f32.gmra.mxu0 %v1548
  %v1550 = vpop.f32.mrf.mxu0
  %v1551 = vadd.f32 %v1502, %v1550
  %v1552 = vand.u32 %v14, 4294901760
  %1553 = vmatmul.f32.gmra.mxu0 %v1552
  %v1554 = vpop.f32.mrf.mxu0
  %v1555 = vadd.f32 %v1506, %v1554
  %v1556 = vand.u32 %v15, 4294901760
  %1557 = vmatmul.f32.gmra.mxu0 %v1556
  %v1558 = vpop.f32.mrf.mxu0
  %v1559 = vadd.f32 %v1510, %v1558
  %1560 = vdwg.mxu0
  %vm1561 = vcmp.eq.s32.totalorder %v1077, 0
  %v1562 = vsel %vm1561, 1, 0
  %v1563 = vcvt.s32.f32 %v1562
  %v1565 = vperm.slane %v1563, 0
  %v1567 = vmul.f32 %v1565, %v1547
  %vm1568 = vcmp.eq.s32.totalorder %v1077, 1
  %v1569 = vsel %vm1568, 1, 0
  %v1570 = vcvt.s32.f32 %v1569
  %v1572 = vperm.slane %v1570, 0
  %v1574 = vmul.f32 %v1572, %v1551
  %v1575 = vadd.f32 %v1567, %v1574
  %vm1576 = vcmp.eq.s32.totalorder %v1077, 2
  %v1577 = vsel %vm1576, 1, 0
  %v1578 = vcvt.s32.f32 %v1577
  %v1580 = vperm.slane %v1578, 0
  %v1582 = vmul.f32 %v1580, %v1555
  %v1583 = vadd.f32 %v1575, %v1582
  %vm1584 = vcmp.eq.s32.totalorder %v1077, 3
  %v1585 = vsel %vm1584, 1, 0
  %v1586 = vcvt.s32.f32 %v1585
  %v1588 = vperm.slane %v1586, 0
  %v1590 = vmul.f32 %v1588, %v1559
  %v1591 = vadd.f32 %v1583, %v1590
  %1592 = vst [vmem:[%s2 + $0x10] sm:$0xff] %v1591
  %v1593 = vmul.u32 %v11, 668265263
  %v1594 = vadd.s32 %v1593, 3042594569
  %v1595 = vshrl.u32 %v1594, 23
  %v1596 = vand.u32 %v1595, 127
  %v1597 = vshrl.u32 %v1595, 7
  %v1598 = vperm.slane %v1596, 0
  %vm1599 = vcmp.eq.s32.totalorder %v17, %v1598
  %vm1600 = vcmp.eq.s32.totalorder %v18, %v1598
  %vm1601 = vcmp.eq.s32.totalorder %v19, %v1598
  %vm1602 = vcmp.eq.s32.totalorder %v20, %v1598
  %vm1603 = vcmp.eq.s32.totalorder %v21, %v1598
  %vm1604 = vcmp.eq.s32.totalorder %v22, %v1598
  %vm1605 = vcmp.eq.s32.totalorder %v23, %v1598
  %vm1606 = vcmp.eq.s32.totalorder %v24, %v1598
  %vm1607 = vcmp.eq.s32.totalorder %v25, %v1598
  %vm1608 = vcmp.eq.s32.totalorder %v26, %v1598
  %vm1609 = vcmp.eq.s32.totalorder %v27, %v1598
  %vm1610 = vcmp.eq.s32.totalorder %v28, %v1598
  %vm1611 = vcmp.eq.s32.totalorder %v29, %v1598
  %vm1612 = vcmp.eq.s32.totalorder %v30, %v1598
  %vm1613 = vcmp.eq.s32.totalorder %v31, %v1598
  %vm1614 = vcmp.eq.s32.totalorder %v32, %v1598
  %v1615 = vsel %vm1599, 1, 0
  %v1616 = vsel %vm1600, 1, 0
  %v1617 = vsel %vm1601, 1, 0
  %v1618 = vsel %vm1602, 1, 0
  %v1619 = vsel %vm1603, 1, 0
  %v1620 = vsel %vm1604, 1, 0
  %v1621 = vsel %vm1605, 1, 0
  %v1622 = vsel %vm1606, 1, 0
  %v1623 = vsel %vm1607, 1, 0
  %v1624 = vsel %vm1608, 1, 0
  %v1625 = vsel %vm1609, 1, 0
  %v1626 = vsel %vm1610, 1, 0
  %v1627 = vsel %vm1611, 1, 0
  %v1628 = vsel %vm1612, 1, 0
  %v1629 = vsel %vm1613, 1, 0
  %v1630 = vsel %vm1614, 1, 0
  %v1631 = vcvt.s32.f32 %v1615
  %v1632 = vcvt.s32.f32 %v1616
  %v1633 = vcvt.s32.f32 %v1617
  %v1634 = vcvt.s32.f32 %v1618
  %v1635 = vcvt.s32.f32 %v1619
  %v1636 = vcvt.s32.f32 %v1620
  %v1637 = vcvt.s32.f32 %v1621
  %v1638 = vcvt.s32.f32 %v1622
  %v1639 = vcvt.s32.f32 %v1623
  %v1640 = vcvt.s32.f32 %v1624
  %v1641 = vcvt.s32.f32 %v1625
  %v1642 = vcvt.s32.f32 %v1626
  %v1643 = vcvt.s32.f32 %v1627
  %v1644 = vcvt.s32.f32 %v1628
  %v1645 = vcvt.s32.f32 %v1629
  %v1646 = vcvt.s32.f32 %v1630
  %v1647 = vand.u32 %v1646, 4294901760
  %1648 = vmatpush.msra.mxu0 %v1647
  %v1649 = vand.u32 %v1645, 4294901760
  %1650 = vmatpush.msra.mxu0 %v1649
  %v1651 = vand.u32 %v1644, 4294901760
  %1652 = vmatpush.msra.mxu0 %v1651
  %v1653 = vand.u32 %v1643, 4294901760
  %1654 = vmatpush.msra.mxu0 %v1653
  %v1655 = vand.u32 %v1642, 4294901760
  %1656 = vmatpush.msra.mxu0 %v1655
  %v1657 = vand.u32 %v1641, 4294901760
  %1658 = vmatpush.msra.mxu0 %v1657
  %v1659 = vand.u32 %v1640, 4294901760
  %1660 = vmatpush.msra.mxu0 %v1659
  %v1661 = vand.u32 %v1639, 4294901760
  %1662 = vmatpush.msra.mxu0 %v1661
  %v1663 = vand.u32 %v1638, 4294901760
  %1664 = vmatpush.msra.mxu0 %v1663
  %v1665 = vand.u32 %v1637, 4294901760
  %1666 = vmatpush.msra.mxu0 %v1665
  %v1667 = vand.u32 %v1636, 4294901760
  %1668 = vmatpush.msra.mxu0 %v1667
  %v1669 = vand.u32 %v1635, 4294901760
  %1670 = vmatpush.msra.mxu0 %v1669
  %v1671 = vand.u32 %v1634, 4294901760
  %1672 = vmatpush.msra.mxu0 %v1671
  %v1673 = vand.u32 %v1633, 4294901760
  %1674 = vmatpush.msra.mxu0 %v1673
  %v1675 = vand.u32 %v1632, 4294901760
  %1676 = vmatpush.msra.mxu0 %v1675
  %v1677 = vand.u32 %v1631, 4294901760
  %1678 = vmatpush.msra.mxu0 %v1677
  %v1679 = vand.u32 %v12, 4294901760
  %v1680 = vsub.f32 %v12, %v1679
  %v1681 = vand.u32 %v1680, 4294901760
  %v1682 = vsub.f32 %v1680, %v1681
  %v1683 = vand.u32 %v1682, 4294901760
  %1684 = vmatmul.f32.gmra.mxu0 %v1683
  %v1685 = vpop.f32.mrf.mxu0
  %v1686 = vadd.f32 0.0, %v1685
  %v1687 = vand.u32 %v13, 4294901760
  %v1688 = vsub.f32 %v13, %v1687
  %v1689 = vand.u32 %v1688, 4294901760
  %v1690 = vsub.f32 %v1688, %v1689
  %v1691 = vand.u32 %v1690, 4294901760
  %1692 = vmatmul.f32.gmra.mxu0 %v1691
  %v1693 = vpop.f32.mrf.mxu0
  %v1694 = vadd.f32 0.0, %v1693
  %v1695 = vand.u32 %v14, 4294901760
  %v1696 = vsub.f32 %v14, %v1695
  %v1697 = vand.u32 %v1696, 4294901760
  %v1698 = vsub.f32 %v1696, %v1697
  %v1699 = vand.u32 %v1698, 4294901760
  %1700 = vmatmul.f32.gmra.mxu0 %v1699
  %v1701 = vpop.f32.mrf.mxu0
  %v1702 = vadd.f32 0.0, %v1701
  %v1703 = vand.u32 %v15, 4294901760
  %v1704 = vsub.f32 %v15, %v1703
  %v1705 = vand.u32 %v1704, 4294901760
  %v1706 = vsub.f32 %v1704, %v1705
  %v1707 = vand.u32 %v1706, 4294901760
  %1708 = vmatmul.f32.gmra.mxu0 %v1707
  %v1709 = vpop.f32.mrf.mxu0
  %v1710 = vadd.f32 0.0, %v1709
  %1711 = vdwg.mxu0
  %v1712 = vand.u32 %v1646, 4294901760
  %v1713 = vsub.f32 %v1646, %v1712
  %v1714 = vand.u32 %v1713, 4294901760
  %v1715 = vsub.f32 %v1713, %v1714
  %v1716 = vand.u32 %v1715, 4294901760
  %1717 = vmatpush.msra.mxu0 %v1716
  %v1718 = vand.u32 %v1645, 4294901760
  %v1719 = vsub.f32 %v1645, %v1718
  %v1720 = vand.u32 %v1719, 4294901760
  %v1721 = vsub.f32 %v1719, %v1720
  %v1722 = vand.u32 %v1721, 4294901760
  %1723 = vmatpush.msra.mxu0 %v1722
  %v1724 = vand.u32 %v1644, 4294901760
  %v1725 = vsub.f32 %v1644, %v1724
  %v1726 = vand.u32 %v1725, 4294901760
  %v1727 = vsub.f32 %v1725, %v1726
  %v1728 = vand.u32 %v1727, 4294901760
  %1729 = vmatpush.msra.mxu0 %v1728
  %v1730 = vand.u32 %v1643, 4294901760
  %v1731 = vsub.f32 %v1643, %v1730
  %v1732 = vand.u32 %v1731, 4294901760
  %v1733 = vsub.f32 %v1731, %v1732
  %v1734 = vand.u32 %v1733, 4294901760
  %1735 = vmatpush.msra.mxu0 %v1734
  %v1736 = vand.u32 %v1642, 4294901760
  %v1737 = vsub.f32 %v1642, %v1736
  %v1738 = vand.u32 %v1737, 4294901760
  %v1739 = vsub.f32 %v1737, %v1738
  %v1740 = vand.u32 %v1739, 4294901760
  %1741 = vmatpush.msra.mxu0 %v1740
  %v1742 = vand.u32 %v1641, 4294901760
  %v1743 = vsub.f32 %v1641, %v1742
  %v1744 = vand.u32 %v1743, 4294901760
  %v1745 = vsub.f32 %v1743, %v1744
  %v1746 = vand.u32 %v1745, 4294901760
  %1747 = vmatpush.msra.mxu0 %v1746
  %v1748 = vand.u32 %v1640, 4294901760
  %v1749 = vsub.f32 %v1640, %v1748
  %v1750 = vand.u32 %v1749, 4294901760
  %v1751 = vsub.f32 %v1749, %v1750
  %v1752 = vand.u32 %v1751, 4294901760
  %1753 = vmatpush.msra.mxu0 %v1752
  %v1754 = vand.u32 %v1639, 4294901760
  %v1755 = vsub.f32 %v1639, %v1754
  %v1756 = vand.u32 %v1755, 4294901760
  %v1757 = vsub.f32 %v1755, %v1756
  %v1758 = vand.u32 %v1757, 4294901760
  %1759 = vmatpush.msra.mxu0 %v1758
  %v1760 = vand.u32 %v1638, 4294901760
  %v1761 = vsub.f32 %v1638, %v1760
  %v1762 = vand.u32 %v1761, 4294901760
  %v1763 = vsub.f32 %v1761, %v1762
  %v1764 = vand.u32 %v1763, 4294901760
  %1765 = vmatpush.msra.mxu0 %v1764
  %v1766 = vand.u32 %v1637, 4294901760
  %v1767 = vsub.f32 %v1637, %v1766
  %v1768 = vand.u32 %v1767, 4294901760
  %v1769 = vsub.f32 %v1767, %v1768
  %v1770 = vand.u32 %v1769, 4294901760
  %1771 = vmatpush.msra.mxu0 %v1770
  %v1772 = vand.u32 %v1636, 4294901760
  %v1773 = vsub.f32 %v1636, %v1772
  %v1774 = vand.u32 %v1773, 4294901760
  %v1775 = vsub.f32 %v1773, %v1774
  %v1776 = vand.u32 %v1775, 4294901760
  %1777 = vmatpush.msra.mxu0 %v1776
  %v1778 = vand.u32 %v1635, 4294901760
  %v1779 = vsub.f32 %v1635, %v1778
  %v1780 = vand.u32 %v1779, 4294901760
  %v1781 = vsub.f32 %v1779, %v1780
  %v1782 = vand.u32 %v1781, 4294901760
  %1783 = vmatpush.msra.mxu0 %v1782
  %v1784 = vand.u32 %v1634, 4294901760
  %v1785 = vsub.f32 %v1634, %v1784
  %v1786 = vand.u32 %v1785, 4294901760
  %v1787 = vsub.f32 %v1785, %v1786
  %v1788 = vand.u32 %v1787, 4294901760
  %1789 = vmatpush.msra.mxu0 %v1788
  %v1790 = vand.u32 %v1633, 4294901760
  %v1791 = vsub.f32 %v1633, %v1790
  %v1792 = vand.u32 %v1791, 4294901760
  %v1793 = vsub.f32 %v1791, %v1792
  %v1794 = vand.u32 %v1793, 4294901760
  %1795 = vmatpush.msra.mxu0 %v1794
  %v1796 = vand.u32 %v1632, 4294901760
  %v1797 = vsub.f32 %v1632, %v1796
  %v1798 = vand.u32 %v1797, 4294901760
  %v1799 = vsub.f32 %v1797, %v1798
  %v1800 = vand.u32 %v1799, 4294901760
  %1801 = vmatpush.msra.mxu0 %v1800
  %v1802 = vand.u32 %v1631, 4294901760
  %v1803 = vsub.f32 %v1631, %v1802
  %v1804 = vand.u32 %v1803, 4294901760
  %v1805 = vsub.f32 %v1803, %v1804
  %v1806 = vand.u32 %v1805, 4294901760
  %1807 = vmatpush.msra.mxu0 %v1806
  %v1808 = vand.u32 %v12, 4294901760
  %1809 = vmatmul.f32.gmra.mxu0 %v1808
  %v1810 = vpop.f32.mrf.mxu0
  %v1811 = vadd.f32 %v1686, %v1810
  %v1812 = vand.u32 %v13, 4294901760
  %1813 = vmatmul.f32.gmra.mxu0 %v1812
  %v1814 = vpop.f32.mrf.mxu0
  %v1815 = vadd.f32 %v1694, %v1814
  %v1816 = vand.u32 %v14, 4294901760
  %1817 = vmatmul.f32.gmra.mxu0 %v1816
  %v1818 = vpop.f32.mrf.mxu0
  %v1819 = vadd.f32 %v1702, %v1818
  %v1820 = vand.u32 %v15, 4294901760
  %1821 = vmatmul.f32.gmra.mxu0 %v1820
  %v1822 = vpop.f32.mrf.mxu0
  %v1823 = vadd.f32 %v1710, %v1822
  %1824 = vdwg.mxu0
  %v1825 = vand.u32 %v1646, 4294901760
  %v1826 = vsub.f32 %v1646, %v1825
  %1827 = vmatpush.msra.mxu0 %v1826
  %v1828 = vand.u32 %v1645, 4294901760
  %v1829 = vsub.f32 %v1645, %v1828
  %1830 = vmatpush.msra.mxu0 %v1829
  %v1831 = vand.u32 %v1644, 4294901760
  %v1832 = vsub.f32 %v1644, %v1831
  %1833 = vmatpush.msra.mxu0 %v1832
  %v1834 = vand.u32 %v1643, 4294901760
  %v1835 = vsub.f32 %v1643, %v1834
  %1836 = vmatpush.msra.mxu0 %v1835
  %v1837 = vand.u32 %v1642, 4294901760
  %v1838 = vsub.f32 %v1642, %v1837
  %1839 = vmatpush.msra.mxu0 %v1838
  %v1840 = vand.u32 %v1641, 4294901760
  %v1841 = vsub.f32 %v1641, %v1840
  %1842 = vmatpush.msra.mxu0 %v1841
  %v1843 = vand.u32 %v1640, 4294901760
  %v1844 = vsub.f32 %v1640, %v1843
  %1845 = vmatpush.msra.mxu0 %v1844
  %v1846 = vand.u32 %v1639, 4294901760
  %v1847 = vsub.f32 %v1639, %v1846
  %1848 = vmatpush.msra.mxu0 %v1847
  %v1849 = vand.u32 %v1638, 4294901760
  %v1850 = vsub.f32 %v1638, %v1849
  %1851 = vmatpush.msra.mxu0 %v1850
  %v1852 = vand.u32 %v1637, 4294901760
  %v1853 = vsub.f32 %v1637, %v1852
  %1854 = vmatpush.msra.mxu0 %v1853
  %v1855 = vand.u32 %v1636, 4294901760
  %v1856 = vsub.f32 %v1636, %v1855
  %1857 = vmatpush.msra.mxu0 %v1856
  %v1858 = vand.u32 %v1635, 4294901760
  %v1859 = vsub.f32 %v1635, %v1858
  %1860 = vmatpush.msra.mxu0 %v1859
  %v1861 = vand.u32 %v1634, 4294901760
  %v1862 = vsub.f32 %v1634, %v1861
  %1863 = vmatpush.msra.mxu0 %v1862
  %v1864 = vand.u32 %v1633, 4294901760
  %v1865 = vsub.f32 %v1633, %v1864
  %1866 = vmatpush.msra.mxu0 %v1865
  %v1867 = vand.u32 %v1632, 4294901760
  %v1868 = vsub.f32 %v1632, %v1867
  %1869 = vmatpush.msra.mxu0 %v1868
  %v1870 = vand.u32 %v1631, 4294901760
  %v1871 = vsub.f32 %v1631, %v1870
  %1872 = vmatpush.msra.mxu0 %v1871
  %v1873 = vand.u32 %v12, 4294901760
  %v1874 = vsub.f32 %v12, %v1873
  %1875 = vmatmul.f32.gmra.mxu0 %v1874
  %v1876 = vpop.f32.mrf.mxu0
  %v1877 = vadd.f32 %v1811, %v1876
  %v1878 = vand.u32 %v13, 4294901760
  %v1879 = vsub.f32 %v13, %v1878
  %1880 = vmatmul.f32.gmra.mxu0 %v1879
  %v1881 = vpop.f32.mrf.mxu0
  %v1882 = vadd.f32 %v1815, %v1881
  %v1883 = vand.u32 %v14, 4294901760
  %v1884 = vsub.f32 %v14, %v1883
  %1885 = vmatmul.f32.gmra.mxu0 %v1884
  %v1886 = vpop.f32.mrf.mxu0
  %v1887 = vadd.f32 %v1819, %v1886
  %v1888 = vand.u32 %v15, 4294901760
  %v1889 = vsub.f32 %v15, %v1888
  %1890 = vmatmul.f32.gmra.mxu0 %v1889
  %v1891 = vpop.f32.mrf.mxu0
  %v1892 = vadd.f32 %v1823, %v1891
  %1893 = vdwg.mxu0
  %v1894 = vand.u32 %v1646, 4294901760
  %1895 = vmatpush.msra.mxu0 %v1894
  %v1896 = vand.u32 %v1645, 4294901760
  %1897 = vmatpush.msra.mxu0 %v1896
  %v1898 = vand.u32 %v1644, 4294901760
  %1899 = vmatpush.msra.mxu0 %v1898
  %v1900 = vand.u32 %v1643, 4294901760
  %1901 = vmatpush.msra.mxu0 %v1900
  %v1902 = vand.u32 %v1642, 4294901760
  %1903 = vmatpush.msra.mxu0 %v1902
  %v1904 = vand.u32 %v1641, 4294901760
  %1905 = vmatpush.msra.mxu0 %v1904
  %v1906 = vand.u32 %v1640, 4294901760
  %1907 = vmatpush.msra.mxu0 %v1906
  %v1908 = vand.u32 %v1639, 4294901760
  %1909 = vmatpush.msra.mxu0 %v1908
  %v1910 = vand.u32 %v1638, 4294901760
  %1911 = vmatpush.msra.mxu0 %v1910
  %v1912 = vand.u32 %v1637, 4294901760
  %1913 = vmatpush.msra.mxu0 %v1912
  %v1914 = vand.u32 %v1636, 4294901760
  %1915 = vmatpush.msra.mxu0 %v1914
  %v1916 = vand.u32 %v1635, 4294901760
  %1917 = vmatpush.msra.mxu0 %v1916
  %v1918 = vand.u32 %v1634, 4294901760
  %1919 = vmatpush.msra.mxu0 %v1918
  %v1920 = vand.u32 %v1633, 4294901760
  %1921 = vmatpush.msra.mxu0 %v1920
  %v1922 = vand.u32 %v1632, 4294901760
  %1923 = vmatpush.msra.mxu0 %v1922
  %v1924 = vand.u32 %v1631, 4294901760
  %1925 = vmatpush.msra.mxu0 %v1924
  %v1926 = vand.u32 %v12, 4294901760
  %v1927 = vsub.f32 %v12, %v1926
  %v1928 = vand.u32 %v1927, 4294901760
  %1929 = vmatmul.f32.gmra.mxu0 %v1928
  %v1930 = vpop.f32.mrf.mxu0
  %v1931 = vadd.f32 %v1877, %v1930
  %v1932 = vand.u32 %v13, 4294901760
  %v1933 = vsub.f32 %v13, %v1932
  %v1934 = vand.u32 %v1933, 4294901760
  %1935 = vmatmul.f32.gmra.mxu0 %v1934
  %v1936 = vpop.f32.mrf.mxu0
  %v1937 = vadd.f32 %v1882, %v1936
  %v1938 = vand.u32 %v14, 4294901760
  %v1939 = vsub.f32 %v14, %v1938
  %v1940 = vand.u32 %v1939, 4294901760
  %1941 = vmatmul.f32.gmra.mxu0 %v1940
  %v1942 = vpop.f32.mrf.mxu0
  %v1943 = vadd.f32 %v1887, %v1942
  %v1944 = vand.u32 %v15, 4294901760
  %v1945 = vsub.f32 %v15, %v1944
  %v1946 = vand.u32 %v1945, 4294901760
  %1947 = vmatmul.f32.gmra.mxu0 %v1946
  %v1948 = vpop.f32.mrf.mxu0
  %v1949 = vadd.f32 %v1892, %v1948
  %1950 = vdwg.mxu0
  %v1951 = vand.u32 %v1646, 4294901760
  %v1952 = vsub.f32 %v1646, %v1951
  %v1953 = vand.u32 %v1952, 4294901760
  %1954 = vmatpush.msra.mxu0 %v1953
  %v1955 = vand.u32 %v1645, 4294901760
  %v1956 = vsub.f32 %v1645, %v1955
  %v1957 = vand.u32 %v1956, 4294901760
  %1958 = vmatpush.msra.mxu0 %v1957
  %v1959 = vand.u32 %v1644, 4294901760
  %v1960 = vsub.f32 %v1644, %v1959
  %v1961 = vand.u32 %v1960, 4294901760
  %1962 = vmatpush.msra.mxu0 %v1961
  %v1963 = vand.u32 %v1643, 4294901760
  %v1964 = vsub.f32 %v1643, %v1963
  %v1965 = vand.u32 %v1964, 4294901760
  %1966 = vmatpush.msra.mxu0 %v1965
  %v1967 = vand.u32 %v1642, 4294901760
  %v1968 = vsub.f32 %v1642, %v1967
  %v1969 = vand.u32 %v1968, 4294901760
  %1970 = vmatpush.msra.mxu0 %v1969
  %v1971 = vand.u32 %v1641, 4294901760
  %v1972 = vsub.f32 %v1641, %v1971
  %v1973 = vand.u32 %v1972, 4294901760
  %1974 = vmatpush.msra.mxu0 %v1973
  %v1975 = vand.u32 %v1640, 4294901760
  %v1976 = vsub.f32 %v1640, %v1975
  %v1977 = vand.u32 %v1976, 4294901760
  %1978 = vmatpush.msra.mxu0 %v1977
  %v1979 = vand.u32 %v1639, 4294901760
  %v1980 = vsub.f32 %v1639, %v1979
  %v1981 = vand.u32 %v1980, 4294901760
  %1982 = vmatpush.msra.mxu0 %v1981
  %v1983 = vand.u32 %v1638, 4294901760
  %v1984 = vsub.f32 %v1638, %v1983
  %v1985 = vand.u32 %v1984, 4294901760
  %1986 = vmatpush.msra.mxu0 %v1985
  %v1987 = vand.u32 %v1637, 4294901760
  %v1988 = vsub.f32 %v1637, %v1987
  %v1989 = vand.u32 %v1988, 4294901760
  %1990 = vmatpush.msra.mxu0 %v1989
  %v1991 = vand.u32 %v1636, 4294901760
  %v1992 = vsub.f32 %v1636, %v1991
  %v1993 = vand.u32 %v1992, 4294901760
  %1994 = vmatpush.msra.mxu0 %v1993
  %v1995 = vand.u32 %v1635, 4294901760
  %v1996 = vsub.f32 %v1635, %v1995
  %v1997 = vand.u32 %v1996, 4294901760
  %1998 = vmatpush.msra.mxu0 %v1997
  %v1999 = vand.u32 %v1634, 4294901760
  %v2000 = vsub.f32 %v1634, %v1999
  %v2001 = vand.u32 %v2000, 4294901760
  %2002 = vmatpush.msra.mxu0 %v2001
  %v2003 = vand.u32 %v1633, 4294901760
  %v2004 = vsub.f32 %v1633, %v2003
  %v2005 = vand.u32 %v2004, 4294901760
  %2006 = vmatpush.msra.mxu0 %v2005
  %v2007 = vand.u32 %v1632, 4294901760
  %v2008 = vsub.f32 %v1632, %v2007
  %v2009 = vand.u32 %v2008, 4294901760
  %2010 = vmatpush.msra.mxu0 %v2009
  %v2011 = vand.u32 %v1631, 4294901760
  %v2012 = vsub.f32 %v1631, %v2011
  %v2013 = vand.u32 %v2012, 4294901760
  %2014 = vmatpush.msra.mxu0 %v2013
  %v2015 = vand.u32 %v12, 4294901760
  %2016 = vmatmul.f32.gmra.mxu0 %v2015
  %v2017 = vpop.f32.mrf.mxu0
  %v2018 = vadd.f32 %v1931, %v2017
  %v2019 = vand.u32 %v13, 4294901760
  %2020 = vmatmul.f32.gmra.mxu0 %v2019
  %v2021 = vpop.f32.mrf.mxu0
  %v2022 = vadd.f32 %v1937, %v2021
  %v2023 = vand.u32 %v14, 4294901760
  %2024 = vmatmul.f32.gmra.mxu0 %v2023
  %v2025 = vpop.f32.mrf.mxu0
  %v2026 = vadd.f32 %v1943, %v2025
  %v2027 = vand.u32 %v15, 4294901760
  %2028 = vmatmul.f32.gmra.mxu0 %v2027
  %v2029 = vpop.f32.mrf.mxu0
  %v2030 = vadd.f32 %v1949, %v2029
  %2031 = vdwg.mxu0
  %v2032 = vand.u32 %v1646, 4294901760
  %2033 = vmatpush.msra.mxu0 %v2032
  %v2034 = vand.u32 %v1645, 4294901760
  %2035 = vmatpush.msra.mxu0 %v2034
  %v2036 = vand.u32 %v1644, 4294901760
  %2037 = vmatpush.msra.mxu0 %v2036
  %v2038 = vand.u32 %v1643, 4294901760
  %2039 = vmatpush.msra.mxu0 %v2038
  %v2040 = vand.u32 %v1642, 4294901760
  %2041 = vmatpush.msra.mxu0 %v2040
  %v2042 = vand.u32 %v1641, 4294901760
  %2043 = vmatpush.msra.mxu0 %v2042
  %v2044 = vand.u32 %v1640, 4294901760
  %2045 = vmatpush.msra.mxu0 %v2044
  %v2046 = vand.u32 %v1639, 4294901760
  %2047 = vmatpush.msra.mxu0 %v2046
  %v2048 = vand.u32 %v1638, 4294901760
  %2049 = vmatpush.msra.mxu0 %v2048
  %v2050 = vand.u32 %v1637, 4294901760
  %2051 = vmatpush.msra.mxu0 %v2050
  %v2052 = vand.u32 %v1636, 4294901760
  %2053 = vmatpush.msra.mxu0 %v2052
  %v2054 = vand.u32 %v1635, 4294901760
  %2055 = vmatpush.msra.mxu0 %v2054
  %v2056 = vand.u32 %v1634, 4294901760
  %2057 = vmatpush.msra.mxu0 %v2056
  %v2058 = vand.u32 %v1633, 4294901760
  %2059 = vmatpush.msra.mxu0 %v2058
  %v2060 = vand.u32 %v1632, 4294901760
  %2061 = vmatpush.msra.mxu0 %v2060
  %v2062 = vand.u32 %v1631, 4294901760
  %2063 = vmatpush.msra.mxu0 %v2062
  %v2064 = vand.u32 %v12, 4294901760
  %2065 = vmatmul.f32.gmra.mxu0 %v2064
  %v2066 = vpop.f32.mrf.mxu0
  %v2067 = vadd.f32 %v2018, %v2066
  %v2068 = vand.u32 %v13, 4294901760
  %2069 = vmatmul.f32.gmra.mxu0 %v2068
  %v2070 = vpop.f32.mrf.mxu0
  %v2071 = vadd.f32 %v2022, %v2070
  %v2072 = vand.u32 %v14, 4294901760
  %2073 = vmatmul.f32.gmra.mxu0 %v2072
  %v2074 = vpop.f32.mrf.mxu0
  %v2075 = vadd.f32 %v2026, %v2074
  %v2076 = vand.u32 %v15, 4294901760
  %2077 = vmatmul.f32.gmra.mxu0 %v2076
  %v2078 = vpop.f32.mrf.mxu0
  %v2079 = vadd.f32 %v2030, %v2078
  %2080 = vdwg.mxu0
  %vm2081 = vcmp.eq.s32.totalorder %v1597, 0
  %v2082 = vsel %vm2081, 1, 0
  %v2083 = vcvt.s32.f32 %v2082
  %v2085 = vperm.slane %v2083, 0
  %v2087 = vmul.f32 %v2085, %v2067
  %vm2088 = vcmp.eq.s32.totalorder %v1597, 1
  %v2089 = vsel %vm2088, 1, 0
  %v2090 = vcvt.s32.f32 %v2089
  %v2092 = vperm.slane %v2090, 0
  %v2094 = vmul.f32 %v2092, %v2071
  %v2095 = vadd.f32 %v2087, %v2094
  %vm2096 = vcmp.eq.s32.totalorder %v1597, 2
  %v2097 = vsel %vm2096, 1, 0
  %v2098 = vcvt.s32.f32 %v2097
  %v2100 = vperm.slane %v2098, 0
  %v2102 = vmul.f32 %v2100, %v2075
  %v2103 = vadd.f32 %v2095, %v2102
  %vm2104 = vcmp.eq.s32.totalorder %v1597, 3
  %v2105 = vsel %vm2104, 1, 0
  %v2106 = vcvt.s32.f32 %v2105
  %v2108 = vperm.slane %v2106, 0
  %v2110 = vmul.f32 %v2108, %v2079
  %v2111 = vadd.f32 %v2103, %v2110
  %2112 = vst [vmem:[%s2 + $0x18] sm:$0xff] %v2111
  // Predicated region
  $region10: #{robe_embedding.1} parent=0 // pred_check
    _
  $region11: #{robe_embedding.1} parent=0 // pred_check_branch
    %2114 = sbr.rel (0) target = $region13
  $region12: #{robe_embedding.1} parent=0 // pred_region
    _
  $region13: #{robe_embedding.1} parent=0 // pred_fallthru
    _
  // Predicated region
  $region14: #{robe_embedding.1} parent=0 // pred_check
    _
  $region15: #{robe_embedding.1} parent=0 // pred_check_branch
    %2116 = sbr.rel (0) target = $region17
  $region16: #{robe_embedding.1} parent=0 // pred_region
    _
  $region17: #{robe_embedding.1} parent=0 // pred_fallthru
    _

</llo_original>
